<compile_context>
chip_gen: v5e
topology: v5e:2x2
jax: 0.10.0
libtpu: 0.0.40
codegen_flags: <defaults>
</compile_context>

<pallas_src>
import functools

import jax
import jax.numpy as jnp
from jax import lax
from jax.experimental import pallas as pl
from jax.experimental.pallas import tpu as pltpu


# ----------------------------- Fused Pallas kernel ---------------------------


def bilstm_fused_kernel(ids_ref,        # VMEM (T*B, 1)  int32 token ids, time-major
                        emb_ref,        # VMEM (V, E)    embedding table
                        wih_ref,        # VMEM (E, 8H)   [fwd | bwd] input->gates (W_ih^T)
                        whh_f_ref,      # VMEM (H, 4H)   forward hidden->gates (W_hh^T)
                        whh_b_ref,      # VMEM (H, 4H)   backward hidden->gates (W_hh^T)
                        b_ref,          # VMEM (1, 8H)   [fwd | bwd] (b_ih + b_hh)
                        wcls_ref,       # VMEM (2H, C)   classifier W^T
                        bcls_ref,       # VMEM (1, C)    classifier bias
                        out_ref,        # VMEM (T*B, 1)  int32 predictions, time-major
                        hcat_sc,        # VMEM scratch (T*B, 2H) concat'd hidden states
                        *, B, T):
    H = whh_f_ref.shape[0]
    H4 = 4 * H
    TB = T * B
    V, _ = emb_ref.shape

    # ---- 1) Embedding gather as a one-hot matmul on the MXU (no dyn. slices). ----
    ids = ids_ref[...]                                          # (TB, 1) int32
    onehot = (lax.broadcasted_iota(jnp.int32, (TB, V), 1) == ids).astype(jnp.float32)
    x2d = jnp.dot(onehot, emb_ref[...], preferred_element_type=jnp.float32)   # (TB, E)

    # ---- 2) Hoisted input projection for BOTH directions in one matmul. ----
    gx = jnp.dot(x2d, wih_ref[...], preferred_element_type=jnp.float32) + b_ref[...]
    # gx: (TB, 8H), columns [0:4H] forward gates, [4H:8H] backward gates.

    # ---- 3) Bidirectional LSTM; only h @ W_hh stays on the serial chain. ----
    for d, whh_r in ((0, whh_f_ref), (1, whh_b_ref)):           # 0 = fwd, 1 = bwd
        whh = whh_r[...]                                        # (H, 4H), loaded once
        h = jnp.zeros((B, H), jnp.float32)
        c = jnp.zeros((B, H), jnp.float32)
        steps = range(T) if d == 0 else range(T - 1, -1, -1)
        for t in steps:
            gates = (gx[t * B:(t + 1) * B, d * H4:(d + 1) * H4]
                     + jnp.dot(h, whh, preferred_element_type=jnp.float32))  # (B, 4H)
            sg = jax.nn.sigmoid(gates)                          # 1 EUP push, full vreg
            th = jnp.tanh(gates)                                # 1 EUP push, full vreg
            i_g = sg[:, 0 * H:1 * H]
            f_g = sg[:, 1 * H:2 * H]
            g_g = th[:, 2 * H:3 * H]
            o_g = sg[:, 3 * H:4 * H]
            c = f_g * c + i_g * g_g
            h = o_g * jnp.tanh(c)
            # Stays in VMEM; directions write disjoint lane halves.
            hcat_sc[t * B:(t + 1) * B, d * H:(d + 1) * H] = h

    # ---- 4) Classifier + argmax (first-max tie-break, like torch.argmax). ----
    feats = hcat_sc[...]                                        # (TB, 2H)
    logits = (jnp.dot(feats, wcls_ref[...], preferred_element_type=jnp.float32)
              + bcls_ref[...])                                  # (TB, C)
    C = logits.shape[-1]
    maxv = jnp.max(logits, axis=-1, keepdims=True)
    iota_c = lax.broadcasted_iota(jnp.int32, logits.shape, 1)
    masked = jnp.where(logits == maxv, iota_c, jnp.full_like(iota_c, C))
    out_ref[...] = jnp.min(masked, axis=-1, keepdims=True)


# --------------------------------- Wrapper -----------------------------------


@jax.jit
def bilstm_forward(text, params):
    """Equivalent of BiLSTMModel.forward(text) (label=None path)."""
    B, T = text.shape
    emb_tab = params["embedding"]                               # (V, E)
    wih = params["w_ih"]                                        # (2, E, 4H)
    whh = params["w_hh"]                                        # (2, H, 4H)
    bias = params["b"]                                          # (2, 1, 4H)
    wcls = params["w_cls"]                                      # (2H, C)
    bcls = params["b_cls"]                                      # (1, C)

    H = whh.shape[1]
    TB = T * B

    # Time-major flat ids: row t*B + b  <->  text[b, t].
    ids_tm = text.T.reshape(TB, 1).astype(jnp.int32)

    # Fuse both directions' input projections into one matmul.
    wih_cat = jnp.concatenate([wih[0], wih[1]], axis=-1)        # (E, 8H)
    b_cat = jnp.concatenate([bias[0], bias[1]], axis=-1)        # (1, 8H)

    vmem_spec = pl.BlockSpec(memory_space=pltpu.MemorySpace.VMEM)

    pred_tm = pl.pallas_call(
        functools.partial(bilstm_fused_kernel, B=B, T=T),
        out_shape=jax.ShapeDtypeStruct((TB, 1), jnp.int32),
        in_specs=[vmem_spec] * 8,
        out_specs=vmem_spec,
        scratch_shapes=[pltpu.VMEM((TB, 2 * H), jnp.float32)],
    )(ids_tm, emb_tab, wih_cat, whh[0], whh[1], b_cat, wcls, bcls)

    # Time-major (t*B + b) -> batch-major (b*T + t), matching torch .reshape(-1).
    return pred_tm.reshape(T, B).T.reshape(-1)


# ----------------------------- Pure-JAX reference -----------------------------


def reference_forward(text, params):
    emb = jnp.take(params["embedding"], text, axis=0)           # (B, T, E)

    def one_dir(x, w_ih_t, w_hh_t, b):
        B, T, _ = x.shape
        H = w_hh_t.shape[0]
        gx = jnp.einsum("bte,eg->btg", x, w_ih_t) + b
        h = jnp.zeros((B, H), jnp.float32)
        c = jnp.zeros((B, H), jnp.float32)
        outs = []
        for t in range(T):
            gates = gx[:, t, :] + h @ w_hh_t
            i_g = jax.nn.sigmoid(gates[:, 0 * H:1 * H])
            f_g = jax.nn.sigmoid(gates[:, 1 * H:2 * H])
            g_g = jnp.tanh(gates[:, 2 * H:3 * H])
            o_g = jax.nn.sigmoid(gates[:, 3 * H:4 * H])
            c = f_g * c + i_g * g_g
            h = o_g * jnp.tanh(c)
            outs.append(h)
        return jnp.stack(outs, axis=1)

    out_f = one_dir(emb, params["w_ih"][0], params["w_hh"][0], params["b"][0])
    out_b = jnp.flip(
        one_dir(jnp.flip(emb, axis=1),
                params["w_ih"][1], params["w_hh"][1], params["b"][1]),
        axis=1,
    )
    out = jnp.concatenate([out_f, out_b], axis=-1)
    logits = out @ params["w_cls"] + params["b_cls"]
    return jnp.argmax(logits, axis=-1).reshape(-1)


# ----------------------------------- Main -------------------------------------


if __name__ == "__main__":
    # Module hyperparameters (small, consistent with the PyTorch __init__).
    corpus_num = 50
    class_num = 8
    embedding_num = 32
    hidden_num = 32
    B, T = 2, 8

    key = jax.random.PRNGKey(0)
    keys = jax.random.split(key, 8)
    scale = 1.0 / jnp.sqrt(hidden_num)

    params = {
        # nn.Embedding(corpus_num, embedding_num)
        "embedding": jax.random.normal(
            keys[0], (corpus_num, embedding_num), jnp.float32),
        # LSTM weights stacked over direction (forward, backward), stored transposed,
        # gate order i, f, g, o; bias is b_ih + b_hh folded.
        "w_ih": jax.random.uniform(
            keys[1], (2, embedding_num, 4 * hidden_num), jnp.float32, -scale, scale),
        "w_hh": jax.random.uniform(
            keys[2], (2, hidden_num, 4 * hidden_num), jnp.float32, -scale, scale),
        "b": jax.random.uniform(
            keys[3], (2, 1, 4 * hidden_num), jnp.float32, -scale, scale),
        # nn.Linear(hidden_num * 2, class_num), stored transposed (2H, C).
        "w_cls": jax.random.uniform(
            keys[4], (2 * hidden_num, class_num), jnp.float32, -scale, scale),
        "b_cls": jax.random.uniform(
            keys[5], (1, class_num), jnp.float32, -scale, scale),
    }

    # Integer token ids, shape (B, T).
    text = jax.random.randint(keys[6], (B, T), 0, corpus_num, dtype=jnp.int32)

    # TODO(synk): the label / CrossEntropyLoss training branch of forward() is not
    # implemented (inference / argmax path only, matching forward(text, label=None)).

    pred = bilstm_forward(text, params)
    pred = jax.block_until_ready(pred)

    ref = reference_forward(text, params)
    assert pred.shape == (B * T,)
    assert jnp.array_equal(pred, ref), (pred, ref)

    print("KERNEL_OK")
</pallas_src>

<mosaic_0001>
module attributes {stable_mosaic.version = 11 : i64} {
  func.func @bilstm_fused_kernel(%arg0: memref<16x1xi32, #tpu.memory_space<vmem>>, %arg1: memref<50x32xf32, #tpu.memory_space<vmem>>, %arg2: memref<32x256xf32, #tpu.memory_space<vmem>>, %arg3: memref<32x128xf32, #tpu.memory_space<vmem>>, %arg4: memref<32x128xf32, #tpu.memory_space<vmem>>, %arg5: memref<1x256xf32, #tpu.memory_space<vmem>>, %arg6: memref<64x8xf32, #tpu.memory_space<vmem>>, %arg7: memref<1x8xf32, #tpu.memory_space<vmem>>, %arg8: memref<16x1xi32, #tpu.memory_space<vmem>>, %arg9: memref<16x64xf32, #tpu.memory_space<vmem>>) attributes {dimension_semantics = [], scalar_prefetch = 0 : i64, scratch_operands = 1 : i64, tpu.core_type = #tpu.core_type<tc>} {
    %c0 = arith.constant 0 : index
    %c0_0 = arith.constant 0 : index
    %0 = vector.load %arg0[%c0, %c0_0] : memref<16x1xi32, #tpu.memory_space<vmem>>, vector<16x1xi32>
    %1 = tpu.iota {dimensions = array<i32: 1>} : vector<16x50xi32>
    %2 = vector.broadcast %0 : vector<16x1xi32> to vector<16x50xi32>
    %3 = arith.cmpi eq, %1, %2 : vector<16x50xi32>
    %4 = arith.extui %3 : vector<16x50xi1> to vector<16x50xi32>
    %5 = arith.sitofp %4 : vector<16x50xi32> to vector<16x50xf32>
    %c0_1 = arith.constant 0 : index
    %c0_2 = arith.constant 0 : index
    %6 = vector.load %arg1[%c0_1, %c0_2] : memref<50x32xf32, #tpu.memory_space<vmem>>, vector<50x32xf32>
    %cst = arith.constant dense<0.000000e+00> : vector<16x32xf32>
    %7 = tpu.matmul %5, %6, %cst {dimension_numbers = #tpu.dot_dimension_numbers<[1], [0], [0], [1], [0, 0, 1, 1], [], []>} : vector<16x50xf32>, vector<50x32xf32>, vector<16x32xf32> -> vector<16x32xf32>
    %c0_3 = arith.constant 0 : index
    %c0_4 = arith.constant 0 : index
    %8 = vector.load %arg2[%c0_3, %c0_4] : memref<32x256xf32, #tpu.memory_space<vmem>>, vector<32x256xf32>
    %cst_5 = arith.constant dense<0.000000e+00> : vector<16x256xf32>
    %9 = tpu.matmul %7, %8, %cst_5 {dimension_numbers = #tpu.dot_dimension_numbers<[1], [0], [0], [1], [0, 0, 1, 1], [], []>} : vector<16x32xf32>, vector<32x256xf32>, vector<16x256xf32> -> vector<16x256xf32>
    %c0_6 = arith.constant 0 : index
    %c0_7 = arith.constant 0 : index
    %10 = vector.load %arg5[%c0_6, %c0_7] : memref<1x256xf32, #tpu.memory_space<vmem>>, vector<1x256xf32>
    %11 = vector.broadcast %10 : vector<1x256xf32> to vector<16x256xf32>
    %12 = arith.addf %9, %11 : vector<16x256xf32>
    %c0_8 = arith.constant 0 : index
    %c0_9 = arith.constant 0 : index
    %13 = vector.load %arg3[%c0_8, %c0_9] : memref<32x128xf32, #tpu.memory_space<vmem>>, vector<32x128xf32>
    %cst_10 = arith.constant 0.000000e+00 : f32
    %14 = vector.broadcast %cst_10 : f32 to vector<2x32xf32>
    %cst_11 = arith.constant 0.000000e+00 : f32
    %15 = vector.broadcast %cst_11 : f32 to vector<2x32xf32>
    %16 = vector.extract_strided_slice %12 {offsets = [0, 0], sizes = [2, 128], strides = [1, 1]} : vector<16x256xf32> to vector<2x128xf32>
    %cst_12 = arith.constant dense<0.000000e+00> : vector<2x128xf32>
    %17 = tpu.matmul %14, %13, %cst_12 {dimension_numbers = #tpu.dot_dimension_numbers<[1], [0], [0], [1], [0, 0, 1, 1], [], []>} : vector<2x32xf32>, vector<32x128xf32>, vector<2x128xf32> -> vector<2x128xf32>
    %18 = arith.addf %16, %17 : vector<2x128xf32>
    %19 = arith.negf %18 : vector<2x128xf32>
    %20 = math.exp %19 : vector<2x128xf32>
    %cst_13 = arith.constant 1.000000e+00 : f32
    %21 = vector.broadcast %cst_13 : f32 to vector<2x128xf32>
    %22 = arith.addf %21, %20 : vector<2x128xf32>
    %23 = arith.divf %21, %22 : vector<2x128xf32>
    %24 = math.tanh %18 : vector<2x128xf32>
    %25 = vector.extract_strided_slice %23 {offsets = [0, 0], sizes = [2, 32], strides = [1, 1]} : vector<2x128xf32> to vector<2x32xf32>
    %26 = vector.extract_strided_slice %23 {offsets = [0, 32], sizes = [2, 32], strides = [1, 1]} : vector<2x128xf32> to vector<2x32xf32>
    %27 = vector.extract_strided_slice %24 {offsets = [0, 64], sizes = [2, 32], strides = [1, 1]} : vector<2x128xf32> to vector<2x32xf32>
    %28 = vector.extract_strided_slice %23 {offsets = [0, 96], sizes = [2, 32], strides = [1, 1]} : vector<2x128xf32> to vector<2x32xf32>
    %29 = arith.mulf %26, %15 : vector<2x32xf32>
    %30 = arith.mulf %25, %27 : vector<2x32xf32>
    %31 = arith.addf %29, %30 : vector<2x32xf32>
    %32 = math.tanh %31 : vector<2x32xf32>
    %33 = arith.mulf %28, %32 : vector<2x32xf32>
    %c0_14 = arith.constant 0 : index
    %c0_15 = arith.constant 0 : index
    %34 = vector.load %arg9[%c0_14, %c0_15] : memref<16x64xf32, #tpu.memory_space<vmem>>, vector<2x32xf32>
    tpu.vector_store %arg9[%c0_14, %c0_15], %33 {strides = array<i32>} : memref<16x64xf32, #tpu.memory_space<vmem>>, vector<2x32xf32>,
    %35 = vector.extract_strided_slice %12 {offsets = [2, 0], sizes = [2, 128], strides = [1, 1]} : vector<16x256xf32> to vector<2x128xf32>
    %cst_16 = arith.constant dense<0.000000e+00> : vector<2x128xf32>
    %36 = tpu.matmul %33, %13, %cst_16 {dimension_numbers = #tpu.dot_dimension_numbers<[1], [0], [0], [1], [0, 0, 1, 1], [], []>} : vector<2x32xf32>, vector<32x128xf32>, vector<2x128xf32> -> vector<2x128xf32>
    %37 = arith.addf %35, %36 : vector<2x128xf32>
    %38 = arith.negf %37 : vector<2x128xf32>
    %39 = math.exp %38 : vector<2x128xf32>
    %cst_17 = arith.constant 1.000000e+00 : f32
    %40 = vector.broadcast %cst_17 : f32 to vector<2x128xf32>
    %41 = arith.addf %40, %39 : vector<2x128xf32>
    %42 = arith.divf %40, %41 : vector<2x128xf32>
    %43 = math.tanh %37 : vector<2x128xf32>
    %44 = vector.extract_strided_slice %42 {offsets = [0, 0], sizes = [2, 32], strides = [1, 1]} : vector<2x128xf32> to vector<2x32xf32>
    %45 = vector.extract_strided_slice %42 {offsets = [0, 32], sizes = [2, 32], strides = [1, 1]} : vector<2x128xf32> to vector<2x32xf32>
    %46 = vector.extract_strided_slice %43 {offsets = [0, 64], sizes = [2, 32], strides = [1, 1]} : vector<2x128xf32> to vector<2x32xf32>
    %47 = vector.extract_strided_slice %42 {offsets = [0, 96], sizes = [2, 32], strides = [1, 1]} : vector<2x128xf32> to vector<2x32xf32>
    %48 = arith.mulf %45, %31 : vector<2x32xf32>
    %49 = arith.mulf %44, %46 : vector<2x32xf32>
    %50 = arith.addf %48, %49 : vector<2x32xf32>
    %51 = math.tanh %50 : vector<2x32xf32>
    %52 = arith.mulf %47, %51 : vector<2x32xf32>
    %c2 = arith.constant 2 : index
    %c0_18 = arith.constant 0 : index
    %53 = vector.load %arg9[%c2, %c0_18] : memref<16x64xf32, #tpu.memory_space<vmem>>, vector<2x32xf32>
    tpu.vector_store %arg9[%c2, %c0_18], %52 {strides = array<i32>} : memref<16x64xf32, #tpu.memory_space<vmem>>, vector<2x32xf32>,
    %54 = vector.extract_strided_slice %12 {offsets = [4, 0], sizes = [2, 128], strides = [1, 1]} : vector<16x256xf32> to vector<2x128xf32>
    %cst_19 = arith.constant dense<0.000000e+00> : vector<2x128xf32>
    %55 = tpu.matmul %52, %13, %cst_19 {dimension_numbers = #tpu.dot_dimension_numbers<[1], [0], [0], [1], [0, 0, 1, 1], [], []>} : vector<2x32xf32>, vector<32x128xf32>, vector<2x128xf32> -> vector<2x128xf32>
    %56 = arith.addf %54, %55 : vector<2x128xf32>
    %57 = arith.negf %56 : vector<2x128xf32>
    %58 = math.exp %57 : vector<2x128xf32>
    %cst_20 = arith.constant 1.000000e+00 : f32
    %59 = vector.broadcast %cst_20 : f32 to vector<2x128xf32>
    %60 = arith.addf %59, %58 : vector<2x128xf32>
    %61 = arith.divf %59, %60 : vector<2x128xf32>
    %62 = math.tanh %56 : vector<2x128xf32>
    %63 = vector.extract_strided_slice %61 {offsets = [0, 0], sizes = [2, 32], strides = [1, 1]} : vector<2x128xf32> to vector<2x32xf32>
    %64 = vector.extract_strided_slice %61 {offsets = [0, 32], sizes = [2, 32], strides = [1, 1]} : vector<2x128xf32> to vector<2x32xf32>
    %65 = vector.extract_strided_slice %62 {offsets = [0, 64], sizes = [2, 32], strides = [1, 1]} : vector<2x128xf32> to vector<2x32xf32>
    %66 = vector.extract_strided_slice %61 {offsets = [0, 96], sizes = [2, 32], strides = [1, 1]} : vector<2x128xf32> to vector<2x32xf32>
    %67 = arith.mulf %64, %50 : vector<2x32xf32>
    %68 = arith.mulf %63, %65 : vector<2x32xf32>
    %69 = arith.addf %67, %68 : vector<2x32xf32>
    %70 = math.tanh %69 : vector<2x32xf32>
    %71 = arith.mulf %66, %70 : vector<2x32xf32>
    %c4 = arith.constant 4 : index
    %c0_21 = arith.constant 0 : index
    %72 = vector.load %arg9[%c4, %c0_21] : memref<16x64xf32, #tpu.memory_space<vmem>>, vector<2x32xf32>
    tpu.vector_store %arg9[%c4, %c0_21], %71 {strides = array<i32>} : memref<16x64xf32, #tpu.memory_space<vmem>>, vector<2x32xf32>,
    %73 = vector.extract_strided_slice %12 {offsets = [6, 0], sizes = [2, 128], strides = [1, 1]} : vector<16x256xf32> to vector<2x128xf32>
    %cst_22 = arith.constant dense<0.000000e+00> : vector<2x128xf32>
    %74 = tpu.matmul %71, %13, %cst_22 {dimension_numbers = #tpu.dot_dimension_numbers<[1], [0], [0], [1], [0, 0, 1, 1], [], []>} : vector<2x32xf32>, vector<32x128xf32>, vector<2x128xf32> -> vector<2x128xf32>
    %75 = arith.addf %73, %74 : vector<2x128xf32>
    %76 = arith.negf %75 : vector<2x128xf32>
    %77 = math.exp %76 : vector<2x128xf32>
    %cst_23 = arith.constant 1.000000e+00 : f32
    %78 = vector.broadcast %cst_23 : f32 to vector<2x128xf32>
    %79 = arith.addf %78, %77 : vector<2x128xf32>
    %80 = arith.divf %78, %79 : vector<2x128xf32>
    %81 = math.tanh %75 : vector<2x128xf32>
    %82 = vector.extract_strided_slice %80 {offsets = [0, 0], sizes = [2, 32], strides = [1, 1]} : vector<2x128xf32> to vector<2x32xf32>
    %83 = vector.extract_strided_slice %80 {offsets = [0, 32], sizes = [2, 32], strides = [1, 1]} : vector<2x128xf32> to vector<2x32xf32>
    %84 = vector.extract_strided_slice %81 {offsets = [0, 64], sizes = [2, 32], strides = [1, 1]} : vector<2x128xf32> to vector<2x32xf32>
    %85 = vector.extract_strided_slice %80 {offsets = [0, 96], sizes = [2, 32], strides = [1, 1]} : vector<2x128xf32> to vector<2x32xf32>
    %86 = arith.mulf %83, %69 : vector<2x32xf32>
    %87 = arith.mulf %82, %84 : vector<2x32xf32>
    %88 = arith.addf %86, %87 : vector<2x32xf32>
    %89 = math.tanh %88 : vector<2x32xf32>
    %90 = arith.mulf %85, %89 : vector<2x32xf32>
    %c6 = arith.constant 6 : index
    %c0_24 = arith.constant 0 : index
    %91 = vector.load %arg9[%c6, %c0_24] : memref<16x64xf32, #tpu.memory_space<vmem>>, vector<2x32xf32>
    tpu.vector_store %arg9[%c6, %c0_24], %90 {strides = array<i32>} : memref<16x64xf32, #tpu.memory_space<vmem>>, vector<2x32xf32>,
    %92 = vector.extract_strided_slice %12 {offsets = [8, 0], sizes = [2, 128], strides = [1, 1]} : vector<16x256xf32> to vector<2x128xf32>
    %cst_25 = arith.constant dense<0.000000e+00> : vector<2x128xf32>
    %93 = tpu.matmul %90, %13, %cst_25 {dimension_numbers = #tpu.dot_dimension_numbers<[1], [0], [0], [1], [0, 0, 1, 1], [], []>} : vector<2x32xf32>, vector<32x128xf32>, vector<2x128xf32> -> vector<2x128xf32>
    %94 = arith.addf %92, %93 : vector<2x128xf32>
    %95 = arith.negf %94 : vector<2x128xf32>
    %96 = math.exp %95 : vector<2x128xf32>
    %cst_26 = arith.constant 1.000000e+00 : f32
    %97 = vector.broadcast %cst_26 : f32 to vector<2x128xf32>
    %98 = arith.addf %97, %96 : vector<2x128xf32>
    %99 = arith.divf %97, %98 : vector<2x128xf32>
    %100 = math.tanh %94 : vector<2x128xf32>
    %101 = vector.extract_strided_slice %99 {offsets = [0, 0], sizes = [2, 32], strides = [1, 1]} : vector<2x128xf32> to vector<2x32xf32>
    %102 = vector.extract_strided_slice %99 {offsets = [0, 32], sizes = [2, 32], strides = [1, 1]} : vector<2x128xf32> to vector<2x32xf32>
    %103 = vector.extract_strided_slice %100 {offsets = [0, 64], sizes = [2, 32], strides = [1, 1]} : vector<2x128xf32> to vector<2x32xf32>
    %104 = vector.extract_strided_slice %99 {offsets = [0, 96], sizes = [2, 32], strides = [1, 1]} : vector<2x128xf32> to vector<2x32xf32>
    %105 = arith.mulf %102, %88 : vector<2x32xf32>
    %106 = arith.mulf %101, %103 : vector<2x32xf32>
    %107 = arith.addf %105, %106 : vector<2x32xf32>
    %108 = math.tanh %107 : vector<2x32xf32>
    %109 = arith.mulf %104, %108 : vector<2x32xf32>
    %c8 = arith.constant 8 : index
    %c0_27 = arith.constant 0 : index
    %110 = vector.load %arg9[%c8, %c0_27] : memref<16x64xf32, #tpu.memory_space<vmem>>, vector<2x32xf32>
    tpu.vector_store %arg9[%c8, %c0_27], %109 {strides = array<i32>} : memref<16x64xf32, #tpu.memory_space<vmem>>, vector<2x32xf32>,
    %111 = vector.extract_strided_slice %12 {offsets = [10, 0], sizes = [2, 128], strides = [1, 1]} : vector<16x256xf32> to vector<2x128xf32>
    %cst_28 = arith.constant dense<0.000000e+00> : vector<2x128xf32>
    %112 = tpu.matmul %109, %13, %cst_28 {dimension_numbers = #tpu.dot_dimension_numbers<[1], [0], [0], [1], [0, 0, 1, 1], [], []>} : vector<2x32xf32>, vector<32x128xf32>, vector<2x128xf32> -> vector<2x128xf32>
    %113 = arith.addf %111, %112 : vector<2x128xf32>
    %114 = arith.negf %113 : vector<2x128xf32>
    %115 = math.exp %114 : vector<2x128xf32>
    %cst_29 = arith.constant 1.000000e+00 : f32
    %116 = vector.broadcast %cst_29 : f32 to vector<2x128xf32>
    %117 = arith.addf %116, %115 : vector<2x128xf32>
    %118 = arith.divf %116, %117 : vector<2x128xf32>
    %119 = math.tanh %113 : vector<2x128xf32>
    %120 = vector.extract_strided_slice %118 {offsets = [0, 0], sizes = [2, 32], strides = [1, 1]} : vector<2x128xf32> to vector<2x32xf32>
    %121 = vector.extract_strided_slice %118 {offsets = [0, 32], sizes = [2, 32], strides = [1, 1]} : vector<2x128xf32> to vector<2x32xf32>
    %122 = vector.extract_strided_slice %119 {offsets = [0, 64], sizes = [2, 32], strides = [1, 1]} : vector<2x128xf32> to vector<2x32xf32>
    %123 = vector.extract_strided_slice %118 {offsets = [0, 96], sizes = [2, 32], strides = [1, 1]} : vector<2x128xf32> to vector<2x32xf32>
    %124 = arith.mulf %121, %107 : vector<2x32xf32>
    %125 = arith.mulf %120, %122 : vector<2x32xf32>
    %126 = arith.addf %124, %125 : vector<2x32xf32>
    %127 = math.tanh %126 : vector<2x32xf32>
    %128 = arith.mulf %123, %127 : vector<2x32xf32>
    %c10 = arith.constant 10 : index
    %c0_30 = arith.constant 0 : index
    %129 = vector.load %arg9[%c10, %c0_30] : memref<16x64xf32, #tpu.memory_space<vmem>>, vector<2x32xf32>
    tpu.vector_store %arg9[%c10, %c0_30], %128 {strides = array<i32>} : memref<16x64xf32, #tpu.memory_space<vmem>>, vector<2x32xf32>,
    %130 = vector.extract_strided_slice %12 {offsets = [12, 0], sizes = [2, 128], strides = [1, 1]} : vector<16x256xf32> to vector<2x128xf32>
    %cst_31 = arith.constant dense<0.000000e+00> : vector<2x128xf32>
    %131 = tpu.matmul %128, %13, %cst_31 {dimension_numbers = #tpu.dot_dimension_numbers<[1], [0], [0], [1], [0, 0, 1, 1], [], []>} : vector<2x32xf32>, vector<32x128xf32>, vector<2x128xf32> -> vector<2x128xf32>
    %132 = arith.addf %130, %131 : vector<2x128xf32>
    %133 = arith.negf %132 : vector<2x128xf32>
    %134 = math.exp %133 : vector<2x128xf32>
    %cst_32 = arith.constant 1.000000e+00 : f32
    %135 = vector.broadcast %cst_32 : f32 to vector<2x128xf32>
    %136 = arith.addf %135, %134 : vector<2x128xf32>
    %137 = arith.divf %135, %136 : vector<2x128xf32>
    %138 = math.tanh %132 : vector<2x128xf32>
    %139 = vector.extract_strided_slice %137 {offsets = [0, 0], sizes = [2, 32], strides = [1, 1]} : vector<2x128xf32> to vector<2x32xf32>
    %140 = vector.extract_strided_slice %137 {offsets = [0, 32], sizes = [2, 32], strides = [1, 1]} : vector<2x128xf32> to vector<2x32xf32>
    %141 = vector.extract_strided_slice %138 {offsets = [0, 64], sizes = [2, 32], strides = [1, 1]} : vector<2x128xf32> to vector<2x32xf32>
    %142 = vector.extract_strided_slice %137 {offsets = [0, 96], sizes = [2, 32], strides = [1, 1]} : vector<2x128xf32> to vector<2x32xf32>
    %143 = arith.mulf %140, %126 : vector<2x32xf32>
    %144 = arith.mulf %139, %141 : vector<2x32xf32>
    %145 = arith.addf %143, %144 : vector<2x32xf32>
    %146 = math.tanh %145 : vector<2x32xf32>
    %147 = arith.mulf %142, %146 : vector<2x32xf32>
    %c12 = arith.constant 12 : index
    %c0_33 = arith.constant 0 : index
    %148 = vector.load %arg9[%c12, %c0_33] : memref<16x64xf32, #tpu.memory_space<vmem>>, vector<2x32xf32>
    tpu.vector_store %arg9[%c12, %c0_33], %147 {strides = array<i32>} : memref<16x64xf32, #tpu.memory_space<vmem>>, vector<2x32xf32>,
    %149 = vector.extract_strided_slice %12 {offsets = [14, 0], sizes = [2, 128], strides = [1, 1]} : vector<16x256xf32> to vector<2x128xf32>
    %cst_34 = arith.constant dense<0.000000e+00> : vector<2x128xf32>
    %150 = tpu.matmul %147, %13, %cst_34 {dimension_numbers = #tpu.dot_dimension_numbers<[1], [0], [0], [1], [0, 0, 1, 1], [], []>} : vector<2x32xf32>, vector<32x128xf32>, vector<2x128xf32> -> vector<2x128xf32>
    %151 = arith.addf %149, %150 : vector<2x128xf32>
    %152 = arith.negf %151 : vector<2x128xf32>
    %153 = math.exp %152 : vector<2x128xf32>
    %cst_35 = arith.constant 1.000000e+00 : f32
    %154 = vector.broadcast %cst_35 : f32 to vector<2x128xf32>
    %155 = arith.addf %154, %153 : vector<2x128xf32>
    %156 = arith.divf %154, %155 : vector<2x128xf32>
    %157 = math.tanh %151 : vector<2x128xf32>
    %158 = vector.extract_strided_slice %156 {offsets = [0, 0], sizes = [2, 32], strides = [1, 1]} : vector<2x128xf32> to vector<2x32xf32>
    %159 = vector.extract_strided_slice %156 {offsets = [0, 32], sizes = [2, 32], strides = [1, 1]} : vector<2x128xf32> to vector<2x32xf32>
    %160 = vector.extract_strided_slice %157 {offsets = [0, 64], sizes = [2, 32], strides = [1, 1]} : vector<2x128xf32> to vector<2x32xf32>
    %161 = vector.extract_strided_slice %156 {offsets = [0, 96], sizes = [2, 32], strides = [1, 1]} : vector<2x128xf32> to vector<2x32xf32>
    %162 = arith.mulf %159, %145 : vector<2x32xf32>
    %163 = arith.mulf %158, %160 : vector<2x32xf32>
    %164 = arith.addf %162, %163 : vector<2x32xf32>
    %165 = math.tanh %164 : vector<2x32xf32>
    %166 = arith.mulf %161, %165 : vector<2x32xf32>
    %c14 = arith.constant 14 : index
    %c0_36 = arith.constant 0 : index
    %167 = vector.load %arg9[%c14, %c0_36] : memref<16x64xf32, #tpu.memory_space<vmem>>, vector<2x32xf32>
    tpu.vector_store %arg9[%c14, %c0_36], %166 {strides = array<i32>} : memref<16x64xf32, #tpu.memory_space<vmem>>, vector<2x32xf32>,
    %c0_37 = arith.constant 0 : index
    %c0_38 = arith.constant 0 : index
    %168 = vector.load %arg4[%c0_37, %c0_38] : memref<32x128xf32, #tpu.memory_space<vmem>>, vector<32x128xf32>
    %cst_39 = arith.constant 0.000000e+00 : f32
    %169 = vector.broadcast %cst_39 : f32 to vector<2x32xf32>
    %cst_40 = arith.constant 0.000000e+00 : f32
    %170 = vector.broadcast %cst_40 : f32 to vector<2x32xf32>
    %171 = vector.extract_strided_slice %12 {offsets = [14, 128], sizes = [2, 128], strides = [1, 1]} : vector<16x256xf32> to vector<2x128xf32>
    %cst_41 = arith.constant dense<0.000000e+00> : vector<2x128xf32>
    %172 = tpu.matmul %169, %168, %cst_41 {dimension_numbers = #tpu.dot_dimension_numbers<[1], [0], [0], [1], [0, 0, 1, 1], [], []>} : vector<2x32xf32>, vector<32x128xf32>, vector<2x128xf32> -> vector<2x128xf32>
    %173 = arith.addf %171, %172 : vector<2x128xf32>
    %174 = arith.negf %173 : vector<2x128xf32>
    %175 = math.exp %174 : vector<2x128xf32>
    %cst_42 = arith.constant 1.000000e+00 : f32
    %176 = vector.broadcast %cst_42 : f32 to vector<2x128xf32>
    %177 = arith.addf %176, %175 : vector<2x128xf32>
    %178 = arith.divf %176, %177 : vector<2x128xf32>
    %179 = math.tanh %173 : vector<2x128xf32>
    %180 = vector.extract_strided_slice %178 {offsets = [0, 0], sizes = [2, 32], strides = [1, 1]} : vector<2x128xf32> to vector<2x32xf32>
    %181 = vector.extract_strided_slice %178 {offsets = [0, 32], sizes = [2, 32], strides = [1, 1]} : vector<2x128xf32> to vector<2x32xf32>
    %182 = vector.extract_strided_slice %179 {offsets = [0, 64], sizes = [2, 32], strides = [1, 1]} : vector<2x128xf32> to vector<2x32xf32>
    %183 = vector.extract_strided_slice %178 {offsets = [0, 96], sizes = [2, 32], strides = [1, 1]} : vector<2x128xf32> to vector<2x32xf32>
    %184 = arith.mulf %181, %170 : vector<2x32xf32>
    %185 = arith.mulf %180, %182 : vector<2x32xf32>
    %186 = arith.addf %184, %185 : vector<2x32xf32>
    %187 = math.tanh %186 : vector<2x32xf32>
    %188 = arith.mulf %183, %187 : vector<2x32xf32>
    %c14_43 = arith.constant 14 : index
    %c32 = arith.constant 32 : index
    %189 = vector.load %arg9[%c14_43, %c32] : memref<16x64xf32, #tpu.memory_space<vmem>>, vector<2x32xf32>
    tpu.vector_store %arg9[%c14_43, %c32], %188 {strides = array<i32>} : memref<16x64xf32, #tpu.memory_space<vmem>>, vector<2x32xf32>,
    %190 = vector.extract_strided_slice %12 {offsets = [12, 128], sizes = [2, 128], strides = [1, 1]} : vector<16x256xf32> to vector<2x128xf32>
    %cst_44 = arith.constant dense<0.000000e+00> : vector<2x128xf32>
    %191 = tpu.matmul %188, %168, %cst_44 {dimension_numbers = #tpu.dot_dimension_numbers<[1], [0], [0], [1], [0, 0, 1, 1], [], []>} : vector<2x32xf32>, vector<32x128xf32>, vector<2x128xf32> -> vector<2x128xf32>
    %192 = arith.addf %190, %191 : vector<2x128xf32>
    %193 = arith.negf %192 : vector<2x128xf32>
    %194 = math.exp %193 : vector<2x128xf32>
    %cst_45 = arith.constant 1.000000e+00 : f32
    %195 = vector.broadcast %cst_45 : f32 to vector<2x128xf32>
    %196 = arith.addf %195, %194 : vector<2x128xf32>
    %197 = arith.divf %195, %196 : vector<2x128xf32>
    %198 = math.tanh %192 : vector<2x128xf32>
    %199 = vector.extract_strided_slice %197 {offsets = [0, 0], sizes = [2, 32], strides = [1, 1]} : vector<2x128xf32> to vector<2x32xf32>
    %200 = vector.extract_strided_slice %197 {offsets = [0, 32], sizes = [2, 32], strides = [1, 1]} : vector<2x128xf32> to vector<2x32xf32>
    %201 = vector.extract_strided_slice %198 {offsets = [0, 64], sizes = [2, 32], strides = [1, 1]} : vector<2x128xf32> to vector<2x32xf32>
    %202 = vector.extract_strided_slice %197 {offsets = [0, 96], sizes = [2, 32], strides = [1, 1]} : vector<2x128xf32> to vector<2x32xf32>
    %203 = arith.mulf %200, %186 : vector<2x32xf32>
    %204 = arith.mulf %199, %201 : vector<2x32xf32>
    %205 = arith.addf %203, %204 : vector<2x32xf32>
    %206 = math.tanh %205 : vector<2x32xf32>
    %207 = arith.mulf %202, %206 : vector<2x32xf32>
    %c12_46 = arith.constant 12 : index
    %c32_47 = arith.constant 32 : index
    %208 = vector.load %arg9[%c12_46, %c32_47] : memref<16x64xf32, #tpu.memory_space<vmem>>, vector<2x32xf32>
    tpu.vector_store %arg9[%c12_46, %c32_47], %207 {strides = array<i32>} : memref<16x64xf32, #tpu.memory_space<vmem>>, vector<2x32xf32>,
    %209 = vector.extract_strided_slice %12 {offsets = [10, 128], sizes = [2, 128], strides = [1, 1]} : vector<16x256xf32> to vector<2x128xf32>
    %cst_48 = arith.constant dense<0.000000e+00> : vector<2x128xf32>
    %210 = tpu.matmul %207, %168, %cst_48 {dimension_numbers = #tpu.dot_dimension_numbers<[1], [0], [0], [1], [0, 0, 1, 1], [], []>} : vector<2x32xf32>, vector<32x128xf32>, vector<2x128xf32> -> vector<2x128xf32>
    %211 = arith.addf %209, %210 : vector<2x128xf32>
    %212 = arith.negf %211 : vector<2x128xf32>
    %213 = math.exp %212 : vector<2x128xf32>
    %cst_49 = arith.constant 1.000000e+00 : f32
    %214 = vector.broadcast %cst_49 : f32 to vector<2x128xf32>
    %215 = arith.addf %214, %213 : vector<2x128xf32>
    %216 = arith.divf %214, %215 : vector<2x128xf32>
    %217 = math.tanh %211 : vector<2x128xf32>
    %218 = vector.extract_strided_slice %216 {offsets = [0, 0], sizes = [2, 32], strides = [1, 1]} : vector<2x128xf32> to vector<2x32xf32>
    %219 = vector.extract_strided_slice %216 {offsets = [0, 32], sizes = [2, 32], strides = [1, 1]} : vector<2x128xf32> to vector<2x32xf32>
    %220 = vector.extract_strided_slice %217 {offsets = [0, 64], sizes = [2, 32], strides = [1, 1]} : vector<2x128xf32> to vector<2x32xf32>
    %221 = vector.extract_strided_slice %216 {offsets = [0, 96], sizes = [2, 32], strides = [1, 1]} : vector<2x128xf32> to vector<2x32xf32>
    %222 = arith.mulf %219, %205 : vector<2x32xf32>
    %223 = arith.mulf %218, %220 : vector<2x32xf32>
    %224 = arith.addf %222, %223 : vector<2x32xf32>
    %225 = math.tanh %224 : vector<2x32xf32>
    %226 = arith.mulf %221, %225 : vector<2x32xf32>
    %c10_50 = arith.constant 10 : index
    %c32_51 = arith.constant 32 : index
    %227 = vector.load %arg9[%c10_50, %c32_51] : memref<16x64xf32, #tpu.memory_space<vmem>>, vector<2x32xf32>
    tpu.vector_store %arg9[%c10_50, %c32_51], %226 {strides = array<i32>} : memref<16x64xf32, #tpu.memory_space<vmem>>, vector<2x32xf32>,
    %228 = vector.extract_strided_slice %12 {offsets = [8, 128], sizes = [2, 128], strides = [1, 1]} : vector<16x256xf32> to vector<2x128xf32>
    %cst_52 = arith.constant dense<0.000000e+00> : vector<2x128xf32>
    %229 = tpu.matmul %226, %168, %cst_52 {dimension_numbers = #tpu.dot_dimension_numbers<[1], [0], [0], [1], [0, 0, 1, 1], [], []>} : vector<2x32xf32>, vector<32x128xf32>, vector<2x128xf32> -> vector<2x128xf32>
    %230 = arith.addf %228, %229 : vector<2x128xf32>
    %231 = arith.negf %230 : vector<2x128xf32>
    %232 = math.exp %231 : vector<2x128xf32>
    %cst_53 = arith.constant 1.000000e+00 : f32
    %233 = vector.broadcast %cst_53 : f32 to vector<2x128xf32>
    %234 = arith.addf %233, %232 : vector<2x128xf32>
    %235 = arith.divf %233, %234 : vector<2x128xf32>
    %236 = math.tanh %230 : vector<2x128xf32>
    %237 = vector.extract_strided_slice %235 {offsets = [0, 0], sizes = [2, 32], strides = [1, 1]} : vector<2x128xf32> to vector<2x32xf32>
    %238 = vector.extract_strided_slice %235 {offsets = [0, 32], sizes = [2, 32], strides = [1, 1]} : vector<2x128xf32> to vector<2x32xf32>
    %239 = vector.extract_strided_slice %236 {offsets = [0, 64], sizes = [2, 32], strides = [1, 1]} : vector<2x128xf32> to vector<2x32xf32>
    %240 = vector.extract_strided_slice %235 {offsets = [0, 96], sizes = [2, 32], strides = [1, 1]} : vector<2x128xf32> to vector<2x32xf32>
    %241 = arith.mulf %238, %224 : vector<2x32xf32>
    %242 = arith.mulf %237, %239 : vector<2x32xf32>
    %243 = arith.addf %241, %242 : vector<2x32xf32>
    %244 = math.tanh %243 : vector<2x32xf32>
    %245 = arith.mulf %240, %244 : vector<2x32xf32>
    %c8_54 = arith.constant 8 : index
    %c32_55 = arith.constant 32 : index
    %246 = vector.load %arg9[%c8_54, %c32_55] : memref<16x64xf32, #tpu.memory_space<vmem>>, vector<2x32xf32>
    tpu.vector_store %arg9[%c8_54, %c32_55], %245 {strides = array<i32>} : memref<16x64xf32, #tpu.memory_space<vmem>>, vector<2x32xf32>,
    %247 = vector.extract_strided_slice %12 {offsets = [6, 128], sizes = [2, 128], strides = [1, 1]} : vector<16x256xf32> to vector<2x128xf32>
    %cst_56 = arith.constant dense<0.000000e+00> : vector<2x128xf32>
    %248 = tpu.matmul %245, %168, %cst_56 {dimension_numbers = #tpu.dot_dimension_numbers<[1], [0], [0], [1], [0, 0, 1, 1], [], []>} : vector<2x32xf32>, vector<32x128xf32>, vector<2x128xf32> -> vector<2x128xf32>
    %249 = arith.addf %247, %248 : vector<2x128xf32>
    %250 = arith.negf %249 : vector<2x128xf32>
    %251 = math.exp %250 : vector<2x128xf32>
    %cst_57 = arith.constant 1.000000e+00 : f32
    %252 = vector.broadcast %cst_57 : f32 to vector<2x128xf32>
    %253 = arith.addf %252, %251 : vector<2x128xf32>
    %254 = arith.divf %252, %253 : vector<2x128xf32>
    %255 = math.tanh %249 : vector<2x128xf32>
    %256 = vector.extract_strided_slice %254 {offsets = [0, 0], sizes = [2, 32], strides = [1, 1]} : vector<2x128xf32> to vector<2x32xf32>
    %257 = vector.extract_strided_slice %254 {offsets = [0, 32], sizes = [2, 32], strides = [1, 1]} : vector<2x128xf32> to vector<2x32xf32>
    %258 = vector.extract_strided_slice %255 {offsets = [0, 64], sizes = [2, 32], strides = [1, 1]} : vector<2x128xf32> to vector<2x32xf32>
    %259 = vector.extract_strided_slice %254 {offsets = [0, 96], sizes = [2, 32], strides = [1, 1]} : vector<2x128xf32> to vector<2x32xf32>
    %260 = arith.mulf %257, %243 : vector<2x32xf32>
    %261 = arith.mulf %256, %258 : vector<2x32xf32>
    %262 = arith.addf %260, %261 : vector<2x32xf32>
    %263 = math.tanh %262 : vector<2x32xf32>
    %264 = arith.mulf %259, %263 : vector<2x32xf32>
    %c6_58 = arith.constant 6 : index
    %c32_59 = arith.constant 32 : index
    %265 = vector.load %arg9[%c6_58, %c32_59] : memref<16x64xf32, #tpu.memory_space<vmem>>, vector<2x32xf32>
    tpu.vector_store %arg9[%c6_58, %c32_59], %264 {strides = array<i32>} : memref<16x64xf32, #tpu.memory_space<vmem>>, vector<2x32xf32>,
    %266 = vector.extract_strided_slice %12 {offsets = [4, 128], sizes = [2, 128], strides = [1, 1]} : vector<16x256xf32> to vector<2x128xf32>
    %cst_60 = arith.constant dense<0.000000e+00> : vector<2x128xf32>
    %267 = tpu.matmul %264, %168, %cst_60 {dimension_numbers = #tpu.dot_dimension_numbers<[1], [0], [0], [1], [0, 0, 1, 1], [], []>} : vector<2x32xf32>, vector<32x128xf32>, vector<2x128xf32> -> vector<2x128xf32>
    %268 = arith.addf %266, %267 : vector<2x128xf32>
    %269 = arith.negf %268 : vector<2x128xf32>
    %270 = math.exp %269 : vector<2x128xf32>
    %cst_61 = arith.constant 1.000000e+00 : f32
    %271 = vector.broadcast %cst_61 : f32 to vector<2x128xf32>
    %272 = arith.addf %271, %270 : vector<2x128xf32>
    %273 = arith.divf %271, %272 : vector<2x128xf32>
    %274 = math.tanh %268 : vector<2x128xf32>
    %275 = vector.extract_strided_slice %273 {offsets = [0, 0], sizes = [2, 32], strides = [1, 1]} : vector<2x128xf32> to vector<2x32xf32>
    %276 = vector.extract_strided_slice %273 {offsets = [0, 32], sizes = [2, 32], strides = [1, 1]} : vector<2x128xf32> to vector<2x32xf32>
    %277 = vector.extract_strided_slice %274 {offsets = [0, 64], sizes = [2, 32], strides = [1, 1]} : vector<2x128xf32> to vector<2x32xf32>
    %278 = vector.extract_strided_slice %273 {offsets = [0, 96], sizes = [2, 32], strides = [1, 1]} : vector<2x128xf32> to vector<2x32xf32>
    %279 = arith.mulf %276, %262 : vector<2x32xf32>
    %280 = arith.mulf %275, %277 : vector<2x32xf32>
    %281 = arith.addf %279, %280 : vector<2x32xf32>
    %282 = math.tanh %281 : vector<2x32xf32>
    %283 = arith.mulf %278, %282 : vector<2x32xf32>
    %c4_62 = arith.constant 4 : index
    %c32_63 = arith.constant 32 : index
    %284 = vector.load %arg9[%c4_62, %c32_63] : memref<16x64xf32, #tpu.memory_space<vmem>>, vector<2x32xf32>
    tpu.vector_store %arg9[%c4_62, %c32_63], %283 {strides = array<i32>} : memref<16x64xf32, #tpu.memory_space<vmem>>, vector<2x32xf32>,
    %285 = vector.extract_strided_slice %12 {offsets = [2, 128], sizes = [2, 128], strides = [1, 1]} : vector<16x256xf32> to vector<2x128xf32>
    %cst_64 = arith.constant dense<0.000000e+00> : vector<2x128xf32>
    %286 = tpu.matmul %283, %168, %cst_64 {dimension_numbers = #tpu.dot_dimension_numbers<[1], [0], [0], [1], [0, 0, 1, 1], [], []>} : vector<2x32xf32>, vector<32x128xf32>, vector<2x128xf32> -> vector<2x128xf32>
    %287 = arith.addf %285, %286 : vector<2x128xf32>
    %288 = arith.negf %287 : vector<2x128xf32>
    %289 = math.exp %288 : vector<2x128xf32>
    %cst_65 = arith.constant 1.000000e+00 : f32
    %290 = vector.broadcast %cst_65 : f32 to vector<2x128xf32>
    %291 = arith.addf %290, %289 : vector<2x128xf32>
    %292 = arith.divf %290, %291 : vector<2x128xf32>
    %293 = math.tanh %287 : vector<2x128xf32>
    %294 = vector.extract_strided_slice %292 {offsets = [0, 0], sizes = [2, 32], strides = [1, 1]} : vector<2x128xf32> to vector<2x32xf32>
    %295 = vector.extract_strided_slice %292 {offsets = [0, 32], sizes = [2, 32], strides = [1, 1]} : vector<2x128xf32> to vector<2x32xf32>
    %296 = vector.extract_strided_slice %293 {offsets = [0, 64], sizes = [2, 32], strides = [1, 1]} : vector<2x128xf32> to vector<2x32xf32>
    %297 = vector.extract_strided_slice %292 {offsets = [0, 96], sizes = [2, 32], strides = [1, 1]} : vector<2x128xf32> to vector<2x32xf32>
    %298 = arith.mulf %295, %281 : vector<2x32xf32>
    %299 = arith.mulf %294, %296 : vector<2x32xf32>
    %300 = arith.addf %298, %299 : vector<2x32xf32>
    %301 = math.tanh %300 : vector<2x32xf32>
    %302 = arith.mulf %297, %301 : vector<2x32xf32>
    %c2_66 = arith.constant 2 : index
    %c32_67 = arith.constant 32 : index
    %303 = vector.load %arg9[%c2_66, %c32_67] : memref<16x64xf32, #tpu.memory_space<vmem>>, vector<2x32xf32>
    tpu.vector_store %arg9[%c2_66, %c32_67], %302 {strides = array<i32>} : memref<16x64xf32, #tpu.memory_space<vmem>>, vector<2x32xf32>,
    %304 = vector.extract_strided_slice %12 {offsets = [0, 128], sizes = [2, 128], strides = [1, 1]} : vector<16x256xf32> to vector<2x128xf32>
    %cst_68 = arith.constant dense<0.000000e+00> : vector<2x128xf32>
    %305 = tpu.matmul %302, %168, %cst_68 {dimension_numbers = #tpu.dot_dimension_numbers<[1], [0], [0], [1], [0, 0, 1, 1], [], []>} : vector<2x32xf32>, vector<32x128xf32>, vector<2x128xf32> -> vector<2x128xf32>
    %306 = arith.addf %304, %305 : vector<2x128xf32>
    %307 = arith.negf %306 : vector<2x128xf32>
    %308 = math.exp %307 : vector<2x128xf32>
    %cst_69 = arith.constant 1.000000e+00 : f32
    %309 = vector.broadcast %cst_69 : f32 to vector<2x128xf32>
    %310 = arith.addf %309, %308 : vector<2x128xf32>
    %311 = arith.divf %309, %310 : vector<2x128xf32>
    %312 = math.tanh %306 : vector<2x128xf32>
    %313 = vector.extract_strided_slice %311 {offsets = [0, 0], sizes = [2, 32], strides = [1, 1]} : vector<2x128xf32> to vector<2x32xf32>
    %314 = vector.extract_strided_slice %311 {offsets = [0, 32], sizes = [2, 32], strides = [1, 1]} : vector<2x128xf32> to vector<2x32xf32>
    %315 = vector.extract_strided_slice %312 {offsets = [0, 64], sizes = [2, 32], strides = [1, 1]} : vector<2x128xf32> to vector<2x32xf32>
    %316 = vector.extract_strided_slice %311 {offsets = [0, 96], sizes = [2, 32], strides = [1, 1]} : vector<2x128xf32> to vector<2x32xf32>
    %317 = arith.mulf %314, %300 : vector<2x32xf32>
    %318 = arith.mulf %313, %315 : vector<2x32xf32>
    %319 = arith.addf %317, %318 : vector<2x32xf32>
    %320 = math.tanh %319 : vector<2x32xf32>
    %321 = arith.mulf %316, %320 : vector<2x32xf32>
    %c0_70 = arith.constant 0 : index
    %c32_71 = arith.constant 32 : index
    %322 = vector.load %arg9[%c0_70, %c32_71] : memref<16x64xf32, #tpu.memory_space<vmem>>, vector<2x32xf32>
    tpu.vector_store %arg9[%c0_70, %c32_71], %321 {strides = array<i32>} : memref<16x64xf32, #tpu.memory_space<vmem>>, vector<2x32xf32>,
    %c0_72 = arith.constant 0 : index
    %c0_73 = arith.constant 0 : index
    %323 = vector.load %arg9[%c0_72, %c0_73] : memref<16x64xf32, #tpu.memory_space<vmem>>, vector<16x64xf32>
    %c0_74 = arith.constant 0 : index
    %c0_75 = arith.constant 0 : index
    %324 = vector.load %arg6[%c0_74, %c0_75] : memref<64x8xf32, #tpu.memory_space<vmem>>, vector<64x8xf32>
    %cst_76 = arith.constant dense<0.000000e+00> : vector<16x8xf32>
    %325 = tpu.matmul %323, %324, %cst_76 {dimension_numbers = #tpu.dot_dimension_numbers<[1], [0], [0], [1], [0, 0, 1, 1], [], []>} : vector<16x64xf32>, vector<64x8xf32>, vector<16x8xf32> -> vector<16x8xf32>
    %c0_77 = arith.constant 0 : index
    %c0_78 = arith.constant 0 : index
    %326 = vector.load %arg7[%c0_77, %c0_78] : memref<1x8xf32, #tpu.memory_space<vmem>>, vector<1x8xf32>
    %327 = vector.broadcast %326 : vector<1x8xf32> to vector<16x8xf32>
    %328 = arith.addf %325, %327 : vector<16x8xf32>
    %cst_79 = arith.constant dense<0xFF800000> : vector<16xf32>
    %329 = vector.multi_reduction <maximumf>, %328, %cst_79 [1] : vector<16x8xf32> to vector<16xf32>
    %330 = vector.shape_cast %329 : vector<16xf32> to vector<16x1xf32>
    %331 = tpu.iota {dimensions = array<i32: 1>} : vector<16x8xi32>
    %332 = vector.broadcast %330 : vector<16x1xf32> to vector<16x8xf32>
    %333 = arith.cmpf oeq, %328, %332 : vector<16x8xf32>
    %c8_i32 = arith.constant 8 : i32
    %334 = vector.broadcast %c8_i32 : i32 to vector<16x8xi32>
    %335 = arith.select %333, %331, %334 : vector<16x8xi1>, vector<16x8xi32>
    %cst_80 = arith.constant dense<2147483647> : vector<16xi32>
    %336 = vector.multi_reduction <minsi>, %335, %cst_80 [1] : vector<16x8xi32> to vector<16xi32>
    %337 = vector.shape_cast %336 : vector<16xi32> to vector<16x1xi32>
    %c0_81 = arith.constant 0 : index
    %c0_82 = arith.constant 0 : index
    %338 = vector.load %arg8[%c0_81, %c0_82] : memref<16x1xi32, #tpu.memory_space<vmem>>, vector<16x1xi32>
    tpu.vector_store %arg8[%c0_81, %c0_82], %337 {strides = array<i32>} : memref<16x1xi32, #tpu.memory_space<vmem>>, vector<16x1xi32>,
    return
  }
}

</mosaic_0001>

<llo_original>
// kernel: bilstm_forward.1
$region0: #{bilstm_forward.1}
  #allocation0 [shape = 'u32[]', space=smem, size = 0x4, offset = 0x4, fixed_abs, tag = 'smem constant byte address 0x4 - core index']
  #allocation1 [shape = 'u32[72,128]{1,0:T(1,128)}', space=vmem, size = 0x9000, scoped, tag = 'internal scratch']
  #allocation2 [shape = 'f32[16,64]{1,0:T(8,128)}', space=vmem, size = 0x2000, scoped, tag = 'scratch operand']
  %s0 = inlined_call_operand.vmem [shape: s32[16,1], index: 0, kind: input, shape index: {}]
  %s1 = inlined_call_operand.vmem [shape: f32[50,32], index: 1, kind: input, shape index: {}]
  %s2 = inlined_call_operand.vmem [shape: f32[32,256], index: 2, kind: input, shape index: {}]
  %s3 = inlined_call_operand.vmem [shape: f32[32,128], index: 3, kind: input, shape index: {}]
  %s4 = inlined_call_operand.vmem [shape: f32[32,128], index: 4, kind: input, shape index: {}]
  %s5 = inlined_call_operand.vmem [shape: f32[1,256], index: 5, kind: input, shape index: {}]
  %s6 = inlined_call_operand.vmem [shape: f32[64,8], index: 6, kind: input, shape index: {}]
  %s7 = inlined_call_operand.vmem [shape: f32[1,8], index: 7, kind: input, shape index: {}]
  %s8 = inlined_call_operand.vmem [shape: s32[16,1], index: 8, kind: output, shape index: {}]
  %s9 = sld [smem:[#allocation0]]
  $region42: #{bilstm_forward.1} parent=0
    _
  %s11 = ssub.s32 1, %s9
  %s12 = scalar_select 0, %s11, %s9
  // Predicated region
  $region2: #{bilstm_forward.1} parent=0 // pred_check
    _
  $region3: #{bilstm_forward.1} parent=0 // pred_check_branch
    %14 = sbr.rel (0) target = $region5
  $region4: #{bilstm_forward.1} parent=0 // pred_region
    _
  $region5: #{bilstm_forward.1} parent=0 // pred_fallthru
    _
  // Predicated region
  $region6: #{bilstm_forward.1} parent=0 // pred_check
    _
  $region7: #{bilstm_forward.1} parent=0 // pred_check_branch
    %16 = sbr.rel (0) target = $region9
  $region8: #{bilstm_forward.1} parent=0 // pred_region
    _
  $region9: #{bilstm_forward.1} parent=0 // pred_fallthru
    _
  // Predicated region
  $region10: #{bilstm_forward.1} parent=0 // pred_check
    _
  $region11: #{bilstm_forward.1} parent=0 // pred_check_branch
    %18 = sbr.rel (0) target = $region13
  $region12: #{bilstm_forward.1} parent=0 // pred_region
    _
  $region13: #{bilstm_forward.1} parent=0 // pred_fallthru
    _
  // Predicated region
  $region14: #{bilstm_forward.1} parent=0 // pred_check
    _
  $region15: #{bilstm_forward.1} parent=0 // pred_check_branch
    %20 = sbr.rel (0) target = $region17
  $region16: #{bilstm_forward.1} parent=0 // pred_region
    _
  $region17: #{bilstm_forward.1} parent=0 // pred_fallthru
    _
  // Predicated region
  $region18: #{bilstm_forward.1} parent=0 // pred_check
    _
  $region19: #{bilstm_forward.1} parent=0 // pred_check_branch
    %22 = sbr.rel (0) target = $region21
  $region20: #{bilstm_forward.1} parent=0 // pred_region
    _
  $region21: #{bilstm_forward.1} parent=0 // pred_fallthru
    _
  // Predicated region
  $region22: #{bilstm_forward.1} parent=0 // pred_check
    _
  $region23: #{bilstm_forward.1} parent=0 // pred_check_branch
    %24 = sbr.rel (0) target = $region25
  $region24: #{bilstm_forward.1} parent=0 // pred_region
    _
  $region25: #{bilstm_forward.1} parent=0 // pred_fallthru
    _
  // Predicated region
  $region26: #{bilstm_forward.1} parent=0 // pred_check
    _
  $region27: #{bilstm_forward.1} parent=0 // pred_check_branch
    %26 = sbr.rel (0) target = $region29
  $region28: #{bilstm_forward.1} parent=0 // pred_region
    _
  $region29: #{bilstm_forward.1} parent=0 // pred_fallthru
    _
  // Predicated region
  $region30: #{bilstm_forward.1} parent=0 // pred_check
    _
  $region31: #{bilstm_forward.1} parent=0 // pred_check_branch
    %28 = sbr.rel (0) target = $region33
  $region32: #{bilstm_forward.1} parent=0 // pred_region
    _
  $region33: #{bilstm_forward.1} parent=0 // pred_fallthru
    _
  %v29 = vld [vmem:[%s0] sm:$0xff]
  %v30 = vld [vmem:[%s0 + $0x8] sm:$0xff]
  %v31 = vlaneseq
  %v32 = vand.u32 %v31, 127
  %33 = vset.pattern.permute.xlu0 0
  %34 = vperm.xlu0 %33, %v29
  %v35 = vpop.permute.xlu0 %34
  %36 = vset.pattern.permute.xlu0 0
  %37 = vperm.xlu0 %36, %v30
  %v38 = vpop.permute.xlu0 %37
  %vm39 = vcmp.eq.s32.totalorder %v32, %v35
  %vm40 = vcmp.eq.s32.totalorder %v32, %v38
  %v41 = vsel %vm39, 1, 0
  %v42 = vsel %vm40, 1, 0
  %v43 = vcvt.s32.f32 %v41
  %v44 = vcvt.s32.f32 %v42
  %v45 = vld [vmem:[%s1] sm:$0xff]
  %v46 = vld [vmem:[%s1 + $0x8] sm:$0xff]
  %v47 = vld [vmem:[%s1 + $0x10] sm:$0xff]
  %v48 = vld [vmem:[%s1 + $0x18] sm:$0xff]
  %v49 = vld [vmem:[%s1 + $0x20] sm:$0xff]
  %v50 = vld [vmem:[%s1 + $0x28] sm:$0xff]
  %v51 = vld [vmem:[%s1 + $0x30] sm:$0x3]
  %vm52 = vcmask 408576
  %v54 = vsel %vm52, %v43, 0
  %v57 = vsel %vm52, %v44, 0
  %vm59 = vcmask 1041408
  %v61 = vsel %vm59, %v51, 0
  %63 = vmatpush.msra.mxu0 0.0
  %64 = vmatpush.msra.mxu0 0.0
  %65 = vmatpush.msra.mxu0 0.0
  %66 = vmatpush.msra.mxu0 0.0
  %67 = vmatpush.msra.mxu0 0.0
  %68 = vmatpush.msra.mxu0 0.0
  %69 = vmatpush.msra.mxu0 0.0
  %70 = vmatpush.msra.mxu0 0.0
  %71 = vmatpush.msra.mxu0 0.0
  %72 = vmatpush.msra.mxu0 %v61
  %73 = vmatpush.msra.mxu0 %v50
  %74 = vmatpush.msra.mxu0 %v49
  %75 = vmatpush.msra.mxu0 %v48
  %76 = vmatpush.msra.mxu0 %v47
  %77 = vmatpush.msra.mxu0 %v46
  %78 = vmatpush.msra.mxu0 %v45
  %79 = vmatmul.f32.gmra.mxu0 %v54
  %v80 = vpop.f32.mrf.mxu0
  %v81 = vadd.f32 0.0, %v80
  %82 = vmatmul.f32.gmra.mxu0 %v57
  %v83 = vpop.f32.mrf.mxu0
  %v84 = vadd.f32 0.0, %v83
  %85 = vdwg.mxu0
  %v86 = vld [vmem:[%s2] sm:$0xff]
  %v87 = vld [vmem:[%s2 + $0x8] sm:$0xff]
  %v88 = vld [vmem:[%s2 + $0x10] sm:$0xff]
  %v89 = vld [vmem:[%s2 + $0x18] sm:$0xff]
  %v90 = vld [vmem:[%s2 + $0x20] sm:$0xff]
  %v91 = vld [vmem:[%s2 + $0x28] sm:$0xff]
  %v92 = vld [vmem:[%s2 + $0x30] sm:$0xff]
  %v93 = vld [vmem:[%s2 + $0x38] sm:$0xff]
  %v94 = vld [vmem:[%s5] sm:$0x3]
  %v96 = vperm.slane %v94, 0
  %v97 = vperm.slane %v94, 1
  %vm100 = vcmask 261120
  %v102 = vsel %vm100, %v81, 0
  %v105 = vsel %vm100, %v84, 0
  %107 = vmatpush.msra.mxu0 0.0
  %108 = vmatpush.msra.mxu0 0.0
  %109 = vmatpush.msra.mxu0 0.0
  %110 = vmatpush.msra.mxu0 0.0
  %111 = vmatpush.msra.mxu0 0.0
  %112 = vmatpush.msra.mxu0 0.0
  %113 = vmatpush.msra.mxu0 0.0
  %114 = vmatpush.msra.mxu0 0.0
  %115 = vmatpush.msra.mxu0 0.0
  %116 = vmatpush.msra.mxu0 0.0
  %117 = vmatpush.msra.mxu0 0.0
  %118 = vmatpush.msra.mxu0 0.0
  %119 = vmatpush.msra.mxu0 %v92
  %120 = vmatpush.msra.mxu0 %v90
  %121 = vmatpush.msra.mxu0 %v88
  %122 = vmatpush.msra.mxu0 %v86
  %123 = vmatmul.f32.gmra.mxu0 %v102
  %v124 = vpop.f32.mrf.mxu0
  %v125 = vadd.f32 %v96, %v124
  %126 = vmatmul.f32.gmra.mxu0 %v105
  %v127 = vpop.f32.mrf.mxu0
  %v128 = vadd.f32 %v96, %v127
  %129 = vdwg.mxu0
  %130 = vmatpush.msra.mxu0 0.0
  %131 = vmatpush.msra.mxu0 0.0
  %132 = vmatpush.msra.mxu0 0.0
  %133 = vmatpush.msra.mxu0 0.0
  %134 = vmatpush.msra.mxu0 0.0
  %135 = vmatpush.msra.mxu0 0.0
  %136 = vmatpush.msra.mxu0 0.0
  %137 = vmatpush.msra.mxu0 0.0
  %138 = vmatpush.msra.mxu0 0.0
  %139 = vmatpush.msra.mxu0 0.0
  %140 = vmatpush.msra.mxu0 0.0
  %141 = vmatpush.msra.mxu0 0.0
  %142 = vmatpush.msra.mxu0 %v93
  %143 = vmatpush.msra.mxu0 %v91
  %144 = vmatpush.msra.mxu0 %v89
  %145 = vmatpush.msra.mxu0 %v87
  %146 = vmatmul.f32.gmra.mxu0 %v102
  %v147 = vpop.f32.mrf.mxu0
  %v148 = vadd.f32 %v97, %v147
  %149 = vmatmul.f32.gmra.mxu0 %v105
  %v150 = vpop.f32.mrf.mxu0
  %v151 = vadd.f32 %v97, %v150
  %152 = vdwg.mxu0
  %v153 = vld [vmem:[%s3] sm:$0xff]
  %v154 = vld [vmem:[%s3 + $0x8] sm:$0xff]
  %v155 = vld [vmem:[%s3 + $0x10] sm:$0xff]
  %v156 = vld [vmem:[%s3 + $0x18] sm:$0xff]
  %v158 = vsel %vm100, 0.0, 0
  %160 = vmatpush.msra.mxu0 0.0
  %161 = vmatpush.msra.mxu0 0.0
  %162 = vmatpush.msra.mxu0 0.0
  %163 = vmatpush.msra.mxu0 0.0
  %164 = vmatpush.msra.mxu0 0.0
  %165 = vmatpush.msra.mxu0 0.0
  %166 = vmatpush.msra.mxu0 0.0
  %167 = vmatpush.msra.mxu0 0.0
  %168 = vmatpush.msra.mxu0 0.0
  %169 = vmatpush.msra.mxu0 0.0
  %170 = vmatpush.msra.mxu0 0.0
  %171 = vmatpush.msra.mxu0 0.0
  %172 = vmatpush.msra.mxu0 %v156
  %173 = vmatpush.msra.mxu0 %v155
  %174 = vmatpush.msra.mxu0 %v154
  %175 = vmatpush.msra.mxu0 %v153
  %176 = vmatmul.f32.gmra.mxu0 %v158
  %v177 = vpop.f32.mrf.mxu0
  %v178 = vadd.f32 0.0, %v177
  %179 = vdwg.mxu0
  %v180 = vadd.f32 %v125, %v178
  %v181 = vxor.u32 %v180, 2147483648
  %v182 = vmul.f32 %v181, 1.442695
  %v183 = vpow.pop %v182
  %v184 = vadd.f32 %v183, 1.0
  %v185 = vrcp.pop %v184
  %v186 = vmul.f32 %v184, %v185
  %v187 = vsub.f32 1.0, %v186
  %v188 = vmul.f32 %v185, %v187
  %v189 = vadd.f32 %v185, %v188
  %vm190 = vweird.f32 %v184
  %vm191 = vweird.f32 %v185
  %vm192 = vmor %vm190, %vm191
  %v193 = vsel %vm192, %v185, %v189
  %v194 = vand.u32 2147483647, %v184
  %vm195 = vcmp.eq.f32.partialorder %v194, 8.507059e+37
  %v196 = vand.u32 %v184, 2147483648
  %v197 = vor.u32 1.1754944e-38, %v196
  %v198 = vsel %vm195, %v197, %v193
  %v199 = vmul.f32 1.0, %v198
  %v200 = vtanh.pop %v180
  %v201 = vmul.f32 %v199, 0.0
  %203 = vrot.lane.b32.xlu0 %v200, 64
  %v204 = vpop.permute.xlu0 %203
  %v206 = vmul.f32 %v199, %v204
  %208 = vrot.lane.b32.xlu0 %v206, 32
  %v209 = vpop.permute.xlu0 %208
  %v211 = vadd.f32 %v201, %v209
  %v212 = vtanh.pop %v211
  %214 = vrot.lane.b32.xlu0 %v212, 64
  %v215 = vpop.permute.xlu0 %214
  %v217 = vmul.f32 %v199, %v215
  %219 = vrot.lane.b32.xlu0 %v217, 32
  %v220 = vpop.permute.xlu0 %219
  %vm222 = vcmask 254976
  %223 = vst.msk [vmem:[#allocation2] sm:$0x3] %vm222, %v220
  %v224 = vsel %vm100, %v220, 0
  %226 = vmatpush.msra.mxu0 0.0
  %227 = vmatpush.msra.mxu0 0.0
  %228 = vmatpush.msra.mxu0 0.0
  %229 = vmatpush.msra.mxu0 0.0
  %230 = vmatpush.msra.mxu0 0.0
  %231 = vmatpush.msra.mxu0 0.0
  %232 = vmatpush.msra.mxu0 0.0
  %233 = vmatpush.msra.mxu0 0.0
  %234 = vmatpush.msra.mxu0 0.0
  %235 = vmatpush.msra.mxu0 0.0
  %236 = vmatpush.msra.mxu0 0.0
  %237 = vmatpush.msra.mxu0 0.0
  %238 = vmatpush.msra.mxu0 %v156
  %239 = vmatpush.msra.mxu0 %v155
  %240 = vmatpush.msra.mxu0 %v154
  %241 = vmatpush.msra.mxu0 %v153
  %242 = vmatmul.f32.gmra.mxu0 %v224
  %v243 = vpop.f32.mrf.mxu0
  %v244 = vadd.f32 0.0, %v243
  %245 = vdwg.mxu0
  %v247 = vrot.slane %v244, 6
  %v249 = vadd.f32 %v125, %v247
  %v250 = vxor.u32 %v249, 2147483648
  %v251 = vmul.f32 %v250, 1.442695
  %v252 = vpow.pop %v251
  %v253 = vadd.f32 %v252, 1.0
  %v254 = vrcp.pop %v253
  %v255 = vmul.f32 %v253, %v254
  %v256 = vsub.f32 1.0, %v255
  %v257 = vmul.f32 %v254, %v256
  %v258 = vadd.f32 %v254, %v257
  %vm259 = vweird.f32 %v253
  %vm260 = vweird.f32 %v254
  %vm261 = vmor %vm259, %vm260
  %v262 = vsel %vm261, %v254, %v258
  %v263 = vand.u32 2147483647, %v253
  %vm264 = vcmp.eq.f32.partialorder %v263, 8.507059e+37
  %v265 = vand.u32 %v253, 2147483648
  %v266 = vor.u32 1.1754944e-38, %v265
  %v267 = vsel %vm264, %v266, %v262
  %v268 = vmul.f32 1.0, %v267
  %v269 = vtanh.pop %v249
  %v271 = vrot.slane %v211, 6
  %v273 = vmul.f32 %v268, %v271
  %275 = vrot.lane.b32.xlu0 %v269, 64
  %v276 = vpop.permute.xlu0 %275
  %v278 = vmul.f32 %v268, %v276
  %280 = vrot.lane.b32.xlu0 %v278, 32
  %v281 = vpop.permute.xlu0 %280
  %v283 = vadd.f32 %v273, %v281
  %v284 = vtanh.pop %v283
  %286 = vrot.lane.b32.xlu0 %v284, 64
  %v287 = vpop.permute.xlu0 %286
  %v289 = vmul.f32 %v268, %v287
  %291 = vrot.lane.b32.xlu0 %v289, 32
  %v292 = vpop.permute.xlu0 %291
  %vm294 = vcmask 257026
  %295 = vst.msk [vmem:[#allocation2] sm:$0xc] %vm294, %v292
  %v296 = vrot.slane %v289, 2
  %297 = vrot.lane.b32.xlu0 %v296, 32
  %v298 = vpop.permute.xlu0 %297
  %v299 = vsel %vm100, %v298, 0
  %301 = vmatpush.msra.mxu0 0.0
  %302 = vmatpush.msra.mxu0 0.0
  %303 = vmatpush.msra.mxu0 0.0
  %304 = vmatpush.msra.mxu0 0.0
  %305 = vmatpush.msra.mxu0 0.0
  %306 = vmatpush.msra.mxu0 0.0
  %307 = vmatpush.msra.mxu0 0.0
  %308 = vmatpush.msra.mxu0 0.0
  %309 = vmatpush.msra.mxu0 0.0
  %310 = vmatpush.msra.mxu0 0.0
  %311 = vmatpush.msra.mxu0 0.0
  %312 = vmatpush.msra.mxu0 0.0
  %313 = vmatpush.msra.mxu0 %v156
  %314 = vmatpush.msra.mxu0 %v155
  %315 = vmatpush.msra.mxu0 %v154
  %316 = vmatpush.msra.mxu0 %v153
  %317 = vmatmul.f32.gmra.mxu0 %v299
  %v318 = vpop.f32.mrf.mxu0
  %v319 = vadd.f32 0.0, %v318
  %320 = vdwg.mxu0
  %v322 = vrot.slane %v319, 4
  %v324 = vadd.f32 %v125, %v322
  %v325 = vxor.u32 %v324, 2147483648
  %v326 = vmul.f32 %v325, 1.442695
  %v327 = vpow.pop %v326
  %v328 = vadd.f32 %v327, 1.0
  %v329 = vrcp.pop %v328
  %v330 = vmul.f32 %v328, %v329
  %v331 = vsub.f32 1.0, %v330
  %v332 = vmul.f32 %v329, %v331
  %v333 = vadd.f32 %v329, %v332
  %vm334 = vweird.f32 %v328
  %vm335 = vweird.f32 %v329
  %vm336 = vmor %vm334, %vm335
  %v337 = vsel %vm336, %v329, %v333
  %v338 = vand.u32 2147483647, %v328
  %vm339 = vcmp.eq.f32.partialorder %v338, 8.507059e+37
  %v340 = vand.u32 %v328, 2147483648
  %v341 = vor.u32 1.1754944e-38, %v340
  %v342 = vsel %vm339, %v341, %v337
  %v343 = vmul.f32 1.0, %v342
  %v344 = vtanh.pop %v324
  %v346 = vrot.slane %v283, 6
  %v348 = vmul.f32 %v343, %v346
  %350 = vrot.lane.b32.xlu0 %v344, 64
  %v351 = vpop.permute.xlu0 %350
  %v353 = vmul.f32 %v343, %v351
  %355 = vrot.lane.b32.xlu0 %v353, 32
  %v356 = vpop.permute.xlu0 %355
  %v358 = vadd.f32 %v348, %v356
  %v359 = vtanh.pop %v358
  %361 = vrot.lane.b32.xlu0 %v359, 64
  %v362 = vpop.permute.xlu0 %361
  %v364 = vmul.f32 %v343, %v362
  %366 = vrot.lane.b32.xlu0 %v364, 32
  %v367 = vpop.permute.xlu0 %366
  %vm369 = vcmask 259076
  %370 = vst.msk [vmem:[#allocation2] sm:$0x30] %vm369, %v367
  %v371 = vrot.slane %v364, 4
  %372 = vrot.lane.b32.xlu0 %v371, 32
  %v373 = vpop.permute.xlu0 %372
  %v374 = vsel %vm100, %v373, 0
  %376 = vmatpush.msra.mxu0 0.0
  %377 = vmatpush.msra.mxu0 0.0
  %378 = vmatpush.msra.mxu0 0.0
  %379 = vmatpush.msra.mxu0 0.0
  %380 = vmatpush.msra.mxu0 0.0
  %381 = vmatpush.msra.mxu0 0.0
  %382 = vmatpush.msra.mxu0 0.0
  %383 = vmatpush.msra.mxu0 0.0
  %384 = vmatpush.msra.mxu0 0.0
  %385 = vmatpush.msra.mxu0 0.0
  %386 = vmatpush.msra.mxu0 0.0
  %387 = vmatpush.msra.mxu0 0.0
  %388 = vmatpush.msra.mxu0 %v156
  %389 = vmatpush.msra.mxu0 %v155
  %390 = vmatpush.msra.mxu0 %v154
  %391 = vmatpush.msra.mxu0 %v153
  %392 = vmatmul.f32.gmra.mxu0 %v374
  %v393 = vpop.f32.mrf.mxu0
  %v394 = vadd.f32 0.0, %v393
  %395 = vdwg.mxu0
  %v397 = vrot.slane %v394, 2
  %v399 = vadd.f32 %v125, %v397
  %v400 = vxor.u32 %v399, 2147483648
  %v401 = vmul.f32 %v400, 1.442695
  %v402 = vpow.pop %v401
  %v403 = vadd.f32 %v402, 1.0
  %v404 = vrcp.pop %v403
  %v405 = vmul.f32 %v403, %v404
  %v406 = vsub.f32 1.0, %v405
  %v407 = vmul.f32 %v404, %v406
  %v408 = vadd.f32 %v404, %v407
  %vm409 = vweird.f32 %v403
  %vm410 = vweird.f32 %v404
  %vm411 = vmor %vm409, %vm410
  %v412 = vsel %vm411, %v404, %v408
  %v413 = vand.u32 2147483647, %v403
  %vm414 = vcmp.eq.f32.partialorder %v413, 8.507059e+37
  %v415 = vand.u32 %v403, 2147483648
  %v416 = vor.u32 1.1754944e-38, %v415
  %v417 = vsel %vm414, %v416, %v412
  %v418 = vmul.f32 1.0, %v417
  %v419 = vtanh.pop %v399
  %v421 = vrot.slane %v358, 6
  %v423 = vmul.f32 %v418, %v421
  %425 = vrot.lane.b32.xlu0 %v419, 64
  %v426 = vpop.permute.xlu0 %425
  %v428 = vmul.f32 %v418, %v426
  %430 = vrot.lane.b32.xlu0 %v428, 32
  %v431 = vpop.permute.xlu0 %430
  %v433 = vadd.f32 %v423, %v431
  %v434 = vtanh.pop %v433
  %436 = vrot.lane.b32.xlu0 %v434, 64
  %v437 = vpop.permute.xlu0 %436
  %v439 = vmul.f32 %v418, %v437
  %441 = vrot.lane.b32.xlu0 %v439, 32
  %v442 = vpop.permute.xlu0 %441
  %vm444 = vcmask 261126
  %445 = vst.msk [vmem:[#allocation2] sm:$0xc0] %vm444, %v442
  %v446 = vrot.slane %v439, 6
  %447 = vrot.lane.b32.xlu0 %v446, 32
  %v448 = vpop.permute.xlu0 %447
  %v449 = vsel %vm100, %v448, 0
  %451 = vmatpush.msra.mxu0 0.0
  %452 = vmatpush.msra.mxu0 0.0
  %453 = vmatpush.msra.mxu0 0.0
  %454 = vmatpush.msra.mxu0 0.0
  %455 = vmatpush.msra.mxu0 0.0
  %456 = vmatpush.msra.mxu0 0.0
  %457 = vmatpush.msra.mxu0 0.0
  %458 = vmatpush.msra.mxu0 0.0
  %459 = vmatpush.msra.mxu0 0.0
  %460 = vmatpush.msra.mxu0 0.0
  %461 = vmatpush.msra.mxu0 0.0
  %462 = vmatpush.msra.mxu0 0.0
  %463 = vmatpush.msra.mxu0 %v156
  %464 = vmatpush.msra.mxu0 %v155
  %465 = vmatpush.msra.mxu0 %v154
  %466 = vmatpush.msra.mxu0 %v153
  %467 = vmatmul.f32.gmra.mxu0 %v449
  %v468 = vpop.f32.mrf.mxu0
  %v469 = vadd.f32 0.0, %v468
  %470 = vdwg.mxu0
  %v471 = vadd.f32 %v128, %v469
  %v472 = vxor.u32 %v471, 2147483648
  %v473 = vmul.f32 %v472, 1.442695
  %v474 = vpow.pop %v473
  %v475 = vadd.f32 %v474, 1.0
  %v476 = vrcp.pop %v475
  %v477 = vmul.f32 %v475, %v476
  %v478 = vsub.f32 1.0, %v477
  %v479 = vmul.f32 %v476, %v478
  %v480 = vadd.f32 %v476, %v479
  %vm481 = vweird.f32 %v475
  %vm482 = vweird.f32 %v476
  %vm483 = vmor %vm481, %vm482
  %v484 = vsel %vm483, %v476, %v480
  %v485 = vand.u32 2147483647, %v475
  %vm486 = vcmp.eq.f32.partialorder %v485, 8.507059e+37
  %v487 = vand.u32 %v475, 2147483648
  %v488 = vor.u32 1.1754944e-38, %v487
  %v489 = vsel %vm486, %v488, %v484
  %v490 = vmul.f32 1.0, %v489
  %v491 = vtanh.pop %v471
  %v493 = vrot.slane %v433, 6
  %v495 = vmul.f32 %v490, %v493
  %497 = vrot.lane.b32.xlu0 %v491, 64
  %v498 = vpop.permute.xlu0 %497
  %v500 = vmul.f32 %v490, %v498
  %502 = vrot.lane.b32.xlu0 %v500, 32
  %v503 = vpop.permute.xlu0 %502
  %v505 = vadd.f32 %v495, %v503
  %v506 = vtanh.pop %v505
  %508 = vrot.lane.b32.xlu0 %v506, 64
  %v509 = vpop.permute.xlu0 %508
  %v511 = vmul.f32 %v490, %v509
  %513 = vrot.lane.b32.xlu0 %v511, 32
  %v514 = vpop.permute.xlu0 %513
  %516 = vst.msk [vmem:[#allocation2 + $0x8] sm:$0x3] %vm222, %v514
  %v517 = vsel %vm100, %v514, 0
  %519 = vmatpush.msra.mxu0 0.0
  %520 = vmatpush.msra.mxu0 0.0
  %521 = vmatpush.msra.mxu0 0.0
  %522 = vmatpush.msra.mxu0 0.0
  %523 = vmatpush.msra.mxu0 0.0
  %524 = vmatpush.msra.mxu0 0.0
  %525 = vmatpush.msra.mxu0 0.0
  %526 = vmatpush.msra.mxu0 0.0
  %527 = vmatpush.msra.mxu0 0.0
  %528 = vmatpush.msra.mxu0 0.0
  %529 = vmatpush.msra.mxu0 0.0
  %530 = vmatpush.msra.mxu0 0.0
  %531 = vmatpush.msra.mxu0 %v156
  %532 = vmatpush.msra.mxu0 %v155
  %533 = vmatpush.msra.mxu0 %v154
  %534 = vmatpush.msra.mxu0 %v153
  %535 = vmatmul.f32.gmra.mxu0 %v517
  %v536 = vpop.f32.mrf.mxu0
  %v537 = vadd.f32 0.0, %v536
  %538 = vdwg.mxu0
  %v540 = vrot.slane %v537, 6
  %v542 = vadd.f32 %v128, %v540
  %v543 = vxor.u32 %v542, 2147483648
  %v544 = vmul.f32 %v543, 1.442695
  %v545 = vpow.pop %v544
  %v546 = vadd.f32 %v545, 1.0
  %v547 = vrcp.pop %v546
  %v548 = vmul.f32 %v546, %v547
  %v549 = vsub.f32 1.0, %v548
  %v550 = vmul.f32 %v547, %v549
  %v551 = vadd.f32 %v547, %v550
  %vm552 = vweird.f32 %v546
  %vm553 = vweird.f32 %v547
  %vm554 = vmor %vm552, %vm553
  %v555 = vsel %vm554, %v547, %v551
  %v556 = vand.u32 2147483647, %v546
  %vm557 = vcmp.eq.f32.partialorder %v556, 8.507059e+37
  %v558 = vand.u32 %v546, 2147483648
  %v559 = vor.u32 1.1754944e-38, %v558
  %v560 = vsel %vm557, %v559, %v555
  %v561 = vmul.f32 1.0, %v560
  %v562 = vtanh.pop %v542
  %v564 = vrot.slane %v505, 6
  %v566 = vmul.f32 %v561, %v564
  %568 = vrot.lane.b32.xlu0 %v562, 64
  %v569 = vpop.permute.xlu0 %568
  %v571 = vmul.f32 %v561, %v569
  %573 = vrot.lane.b32.xlu0 %v571, 32
  %v574 = vpop.permute.xlu0 %573
  %v576 = vadd.f32 %v566, %v574
  %v577 = vtanh.pop %v576
  %579 = vrot.lane.b32.xlu0 %v577, 64
  %v580 = vpop.permute.xlu0 %579
  %v582 = vmul.f32 %v561, %v580
  %584 = vrot.lane.b32.xlu0 %v582, 32
  %v585 = vpop.permute.xlu0 %584
  %587 = vst.msk [vmem:[#allocation2 + $0x8] sm:$0xc] %vm294, %v585
  %v588 = vrot.slane %v582, 2
  %589 = vrot.lane.b32.xlu0 %v588, 32
  %v590 = vpop.permute.xlu0 %589
  %v591 = vsel %vm100, %v590, 0
  %593 = vmatpush.msra.mxu0 0.0
  %594 = vmatpush.msra.mxu0 0.0
  %595 = vmatpush.msra.mxu0 0.0
  %596 = vmatpush.msra.mxu0 0.0
  %597 = vmatpush.msra.mxu0 0.0
  %598 = vmatpush.msra.mxu0 0.0
  %599 = vmatpush.msra.mxu0 0.0
  %600 = vmatpush.msra.mxu0 0.0
  %601 = vmatpush.msra.mxu0 0.0
  %602 = vmatpush.msra.mxu0 0.0
  %603 = vmatpush.msra.mxu0 0.0
  %604 = vmatpush.msra.mxu0 0.0
  %605 = vmatpush.msra.mxu0 %v156
  %606 = vmatpush.msra.mxu0 %v155
  %607 = vmatpush.msra.mxu0 %v154
  %608 = vmatpush.msra.mxu0 %v153
  %609 = vmatmul.f32.gmra.mxu0 %v591
  %v610 = vpop.f32.mrf.mxu0
  %v611 = vadd.f32 0.0, %v610
  %612 = vdwg.mxu0
  %v614 = vrot.slane %v611, 4
  %v616 = vadd.f32 %v128, %v614
  %v617 = vxor.u32 %v616, 2147483648
  %v618 = vmul.f32 %v617, 1.442695
  %v619 = vpow.pop %v618
  %v620 = vadd.f32 %v619, 1.0
  %v621 = vrcp.pop %v620
  %v622 = vmul.f32 %v620, %v621
  %v623 = vsub.f32 1.0, %v622
  %v624 = vmul.f32 %v621, %v623
  %v625 = vadd.f32 %v621, %v624
  %vm626 = vweird.f32 %v620
  %vm627 = vweird.f32 %v621
  %vm628 = vmor %vm626, %vm627
  %v629 = vsel %vm628, %v621, %v625
  %v630 = vand.u32 2147483647, %v620
  %vm631 = vcmp.eq.f32.partialorder %v630, 8.507059e+37
  %v632 = vand.u32 %v620, 2147483648
  %v633 = vor.u32 1.1754944e-38, %v632
  %v634 = vsel %vm631, %v633, %v629
  %v635 = vmul.f32 1.0, %v634
  %v636 = vtanh.pop %v616
  %v638 = vrot.slane %v576, 6
  %v640 = vmul.f32 %v635, %v638
  %642 = vrot.lane.b32.xlu0 %v636, 64
  %v643 = vpop.permute.xlu0 %642
  %v645 = vmul.f32 %v635, %v643
  %647 = vrot.lane.b32.xlu0 %v645, 32
  %v648 = vpop.permute.xlu0 %647
  %v650 = vadd.f32 %v640, %v648
  %v651 = vtanh.pop %v650
  %653 = vrot.lane.b32.xlu0 %v651, 64
  %v654 = vpop.permute.xlu0 %653
  %v656 = vmul.f32 %v635, %v654
  %658 = vrot.lane.b32.xlu0 %v656, 32
  %v659 = vpop.permute.xlu0 %658
  %661 = vst.msk [vmem:[#allocation2 + $0x8] sm:$0x30] %vm369, %v659
  %v662 = vrot.slane %v656, 4
  %663 = vrot.lane.b32.xlu0 %v662, 32
  %v664 = vpop.permute.xlu0 %663
  %v665 = vsel %vm100, %v664, 0
  %667 = vmatpush.msra.mxu0 0.0
  %668 = vmatpush.msra.mxu0 0.0
  %669 = vmatpush.msra.mxu0 0.0
  %670 = vmatpush.msra.mxu0 0.0
  %671 = vmatpush.msra.mxu0 0.0
  %672 = vmatpush.msra.mxu0 0.0
  %673 = vmatpush.msra.mxu0 0.0
  %674 = vmatpush.msra.mxu0 0.0
  %675 = vmatpush.msra.mxu0 0.0
  %676 = vmatpush.msra.mxu0 0.0
  %677 = vmatpush.msra.mxu0 0.0
  %678 = vmatpush.msra.mxu0 0.0
  %679 = vmatpush.msra.mxu0 %v156
  %680 = vmatpush.msra.mxu0 %v155
  %681 = vmatpush.msra.mxu0 %v154
  %682 = vmatpush.msra.mxu0 %v153
  %683 = vmatmul.f32.gmra.mxu0 %v665
  %v684 = vpop.f32.mrf.mxu0
  %v685 = vadd.f32 0.0, %v684
  %686 = vdwg.mxu0
  %v688 = vrot.slane %v685, 2
  %v690 = vadd.f32 %v128, %v688
  %v691 = vxor.u32 %v690, 2147483648
  %v692 = vmul.f32 %v691, 1.442695
  %v693 = vpow.pop %v692
  %v694 = vadd.f32 %v693, 1.0
  %v695 = vrcp.pop %v694
  %v696 = vmul.f32 %v694, %v695
  %v697 = vsub.f32 1.0, %v696
  %v698 = vmul.f32 %v695, %v697
  %v699 = vadd.f32 %v695, %v698
  %vm700 = vweird.f32 %v694
  %vm701 = vweird.f32 %v695
  %vm702 = vmor %vm700, %vm701
  %v703 = vsel %vm702, %v695, %v699
  %v704 = vand.u32 2147483647, %v694
  %vm705 = vcmp.eq.f32.partialorder %v704, 8.507059e+37
  %v706 = vand.u32 %v694, 2147483648
  %v707 = vor.u32 1.1754944e-38, %v706
  %v708 = vsel %vm705, %v707, %v703
  %v709 = vmul.f32 1.0, %v708
  %v710 = vtanh.pop %v690
  %v712 = vrot.slane %v650, 6
  %v714 = vmul.f32 %v709, %v712
  %716 = vrot.lane.b32.xlu0 %v710, 64
  %v717 = vpop.permute.xlu0 %716
  %v719 = vmul.f32 %v709, %v717
  %721 = vrot.lane.b32.xlu0 %v719, 32
  %v722 = vpop.permute.xlu0 %721
  %v724 = vadd.f32 %v714, %v722
  %v725 = vtanh.pop %v724
  %727 = vrot.lane.b32.xlu0 %v725, 64
  %v728 = vpop.permute.xlu0 %727
  %v730 = vmul.f32 %v709, %v728
  %732 = vrot.lane.b32.xlu0 %v730, 32
  %v733 = vpop.permute.xlu0 %732
  %735 = vst.msk [vmem:[#allocation2 + $0x8] sm:$0xc0] %vm444, %v733
  %v736 = vld [vmem:[%s4] sm:$0xff]
  %v737 = vld [vmem:[%s4 + $0x8] sm:$0xff]
  %v738 = vld [vmem:[%s4 + $0x10] sm:$0xff]
  %v739 = vld [vmem:[%s4 + $0x18] sm:$0xff]
  %740 = vmatpush.msra.mxu0 0.0
  %741 = vmatpush.msra.mxu0 0.0
  %742 = vmatpush.msra.mxu0 0.0
  %743 = vmatpush.msra.mxu0 0.0
  %744 = vmatpush.msra.mxu0 0.0
  %745 = vmatpush.msra.mxu0 0.0
  %746 = vmatpush.msra.mxu0 0.0
  %747 = vmatpush.msra.mxu0 0.0
  %748 = vmatpush.msra.mxu0 0.0
  %749 = vmatpush.msra.mxu0 0.0
  %750 = vmatpush.msra.mxu0 0.0
  %751 = vmatpush.msra.mxu0 0.0
  %752 = vmatpush.msra.mxu0 %v739
  %753 = vmatpush.msra.mxu0 %v738
  %754 = vmatpush.msra.mxu0 %v737
  %755 = vmatpush.msra.mxu0 %v736
  %756 = vmatmul.f32.gmra.mxu0 %v158
  %v757 = vpop.f32.mrf.mxu0
  %v758 = vadd.f32 0.0, %v757
  %759 = vdwg.mxu0
  %v761 = vrot.slane %v758, 2
  %v763 = vadd.f32 %v151, %v761
  %v764 = vxor.u32 %v763, 2147483648
  %v765 = vmul.f32 %v764, 1.442695
  %v766 = vpow.pop %v765
  %v767 = vadd.f32 %v766, 1.0
  %v768 = vrcp.pop %v767
  %v769 = vmul.f32 %v767, %v768
  %v770 = vsub.f32 1.0, %v769
  %v771 = vmul.f32 %v768, %v770
  %v772 = vadd.f32 %v768, %v771
  %vm773 = vweird.f32 %v767
  %vm774 = vweird.f32 %v768
  %vm775 = vmor %vm773, %vm774
  %v776 = vsel %vm775, %v768, %v772
  %v777 = vand.u32 2147483647, %v767
  %vm778 = vcmp.eq.f32.partialorder %v777, 8.507059e+37
  %v779 = vand.u32 %v767, 2147483648
  %v780 = vor.u32 1.1754944e-38, %v779
  %v781 = vsel %vm778, %v780, %v776
  %v782 = vmul.f32 1.0, %v781
  %v783 = vtanh.pop %v763
  %v784 = vmul.f32 %v782, 0.0
  %786 = vrot.lane.b32.xlu0 %v783, 64
  %v787 = vpop.permute.xlu0 %786
  %v789 = vmul.f32 %v782, %v787
  %791 = vrot.lane.b32.xlu0 %v789, 32
  %v792 = vpop.permute.xlu0 %791
  %v794 = vadd.f32 %v784, %v792
  %v795 = vtanh.pop %v794
  %797 = vrot.lane.b32.xlu0 %v795, 64
  %v798 = vpop.permute.xlu0 %797
  %v800 = vmul.f32 %v782, %v798
  %802 = vrot.lane.b32.xlu0 %v800, 64
  %v803 = vpop.permute.xlu0 %802
  %vm805 = vcmask 523526
  %806 = vst.msk [vmem:[#allocation2 + $0x8] sm:$0xc0] %vm805, %v803
  %v807 = vrot.slane %v800, 6
  %808 = vrot.lane.b32.xlu0 %v807, 32
  %v809 = vpop.permute.xlu0 %808
  %v810 = vsel %vm100, %v809, 0
  %812 = vmatpush.msra.mxu0 0.0
  %813 = vmatpush.msra.mxu0 0.0
  %814 = vmatpush.msra.mxu0 0.0
  %815 = vmatpush.msra.mxu0 0.0
  %816 = vmatpush.msra.mxu0 0.0
  %817 = vmatpush.msra.mxu0 0.0
  %818 = vmatpush.msra.mxu0 0.0
  %819 = vmatpush.msra.mxu0 0.0
  %820 = vmatpush.msra.mxu0 0.0
  %821 = vmatpush.msra.mxu0 0.0
  %822 = vmatpush.msra.mxu0 0.0
  %823 = vmatpush.msra.mxu0 0.0
  %824 = vmatpush.msra.mxu0 %v739
  %825 = vmatpush.msra.mxu0 %v738
  %826 = vmatpush.msra.mxu0 %v737
  %827 = vmatpush.msra.mxu0 %v736
  %828 = vmatmul.f32.gmra.mxu0 %v810
  %v829 = vpop.f32.mrf.mxu0
  %v830 = vadd.f32 0.0, %v829
  %831 = vdwg.mxu0
  %v833 = vrot.slane %v830, 4
  %v835 = vadd.f32 %v151, %v833
  %v836 = vxor.u32 %v835, 2147483648
  %v837 = vmul.f32 %v836, 1.442695
  %v838 = vpow.pop %v837
  %v839 = vadd.f32 %v838, 1.0
  %v840 = vrcp.pop %v839
  %v841 = vmul.f32 %v839, %v840
  %v842 = vsub.f32 1.0, %v841
  %v843 = vmul.f32 %v840, %v842
  %v844 = vadd.f32 %v840, %v843
  %vm845 = vweird.f32 %v839
  %vm846 = vweird.f32 %v840
  %vm847 = vmor %vm845, %vm846
  %v848 = vsel %vm847, %v840, %v844
  %v849 = vand.u32 2147483647, %v839
  %vm850 = vcmp.eq.f32.partialorder %v849, 8.507059e+37
  %v851 = vand.u32 %v839, 2147483648
  %v852 = vor.u32 1.1754944e-38, %v851
  %v853 = vsel %vm850, %v852, %v848
  %v854 = vmul.f32 1.0, %v853
  %v855 = vtanh.pop %v835
  %v857 = vrot.slane %v794, 2
  %v859 = vmul.f32 %v854, %v857
  %861 = vrot.lane.b32.xlu0 %v855, 64
  %v862 = vpop.permute.xlu0 %861
  %v864 = vmul.f32 %v854, %v862
  %866 = vrot.lane.b32.xlu0 %v864, 32
  %v867 = vpop.permute.xlu0 %866
  %v869 = vadd.f32 %v859, %v867
  %v870 = vtanh.pop %v869
  %872 = vrot.lane.b32.xlu0 %v870, 64
  %v873 = vpop.permute.xlu0 %872
  %v875 = vmul.f32 %v854, %v873
  %877 = vrot.lane.b32.xlu0 %v875, 64
  %v878 = vpop.permute.xlu0 %877
  %vm880 = vcmask 521476
  %881 = vst.msk [vmem:[#allocation2 + $0x8] sm:$0x30] %vm880, %v878
  %v882 = vrot.slane %v875, 4
  %883 = vrot.lane.b32.xlu0 %v882, 32
  %v884 = vpop.permute.xlu0 %883
  %v885 = vsel %vm100, %v884, 0
  %887 = vmatpush.msra.mxu0 0.0
  %888 = vmatpush.msra.mxu0 0.0
  %889 = vmatpush.msra.mxu0 0.0
  %890 = vmatpush.msra.mxu0 0.0
  %891 = vmatpush.msra.mxu0 0.0
  %892 = vmatpush.msra.mxu0 0.0
  %893 = vmatpush.msra.mxu0 0.0
  %894 = vmatpush.msra.mxu0 0.0
  %895 = vmatpush.msra.mxu0 0.0
  %896 = vmatpush.msra.mxu0 0.0
  %897 = vmatpush.msra.mxu0 0.0
  %898 = vmatpush.msra.mxu0 0.0
  %899 = vmatpush.msra.mxu0 %v739
  %900 = vmatpush.msra.mxu0 %v738
  %901 = vmatpush.msra.mxu0 %v737
  %902 = vmatpush.msra.mxu0 %v736
  %903 = vmatmul.f32.gmra.mxu0 %v885
  %v904 = vpop.f32.mrf.mxu0
  %v905 = vadd.f32 0.0, %v904
  %906 = vdwg.mxu0
  %v908 = vrot.slane %v905, 6
  %v910 = vadd.f32 %v151, %v908
  %v911 = vxor.u32 %v910, 2147483648
  %v912 = vmul.f32 %v911, 1.442695
  %v913 = vpow.pop %v912
  %v914 = vadd.f32 %v913, 1.0
  %v915 = vrcp.pop %v914
  %v916 = vmul.f32 %v914, %v915
  %v917 = vsub.f32 1.0, %v916
  %v918 = vmul.f32 %v915, %v917
  %v919 = vadd.f32 %v915, %v918
  %vm920 = vweird.f32 %v914
  %vm921 = vweird.f32 %v915
  %vm922 = vmor %vm920, %vm921
  %v923 = vsel %vm922, %v915, %v919
  %v924 = vand.u32 2147483647, %v914
  %vm925 = vcmp.eq.f32.partialorder %v924, 8.507059e+37
  %v926 = vand.u32 %v914, 2147483648
  %v927 = vor.u32 1.1754944e-38, %v926
  %v928 = vsel %vm925, %v927, %v923
  %v929 = vmul.f32 1.0, %v928
  %v930 = vtanh.pop %v910
  %v932 = vrot.slane %v869, 2
  %v934 = vmul.f32 %v929, %v932
  %936 = vrot.lane.b32.xlu0 %v930, 64
  %v937 = vpop.permute.xlu0 %936
  %v939 = vmul.f32 %v929, %v937
  %941 = vrot.lane.b32.xlu0 %v939, 32
  %v942 = vpop.permute.xlu0 %941
  %v944 = vadd.f32 %v934, %v942
  %v945 = vtanh.pop %v944
  %947 = vrot.lane.b32.xlu0 %v945, 64
  %v948 = vpop.permute.xlu0 %947
  %v950 = vmul.f32 %v929, %v948
  %952 = vrot.lane.b32.xlu0 %v950, 64
  %v953 = vpop.permute.xlu0 %952
  %vm955 = vcmask 519426
  %956 = vst.msk [vmem:[#allocation2 + $0x8] sm:$0xc] %vm955, %v953
  %v957 = vrot.slane %v950, 2
  %958 = vrot.lane.b32.xlu0 %v957, 32
  %v959 = vpop.permute.xlu0 %958
  %v960 = vsel %vm100, %v959, 0
  %962 = vmatpush.msra.mxu0 0.0
  %963 = vmatpush.msra.mxu0 0.0
  %964 = vmatpush.msra.mxu0 0.0
  %965 = vmatpush.msra.mxu0 0.0
  %966 = vmatpush.msra.mxu0 0.0
  %967 = vmatpush.msra.mxu0 0.0
  %968 = vmatpush.msra.mxu0 0.0
  %969 = vmatpush.msra.mxu0 0.0
  %970 = vmatpush.msra.mxu0 0.0
  %971 = vmatpush.msra.mxu0 0.0
  %972 = vmatpush.msra.mxu0 0.0
  %973 = vmatpush.msra.mxu0 0.0
  %974 = vmatpush.msra.mxu0 %v739
  %975 = vmatpush.msra.mxu0 %v738
  %976 = vmatpush.msra.mxu0 %v737
  %977 = vmatpush.msra.mxu0 %v736
  %978 = vmatmul.f32.gmra.mxu0 %v960
  %v979 = vpop.f32.mrf.mxu0
  %v980 = vadd.f32 0.0, %v979
  %981 = vdwg.mxu0
  %v982 = vadd.f32 %v151, %v980
  %v983 = vxor.u32 %v982, 2147483648
  %v984 = vmul.f32 %v983, 1.442695
  %v985 = vpow.pop %v984
  %v986 = vadd.f32 %v985, 1.0
  %v987 = vrcp.pop %v986
  %v988 = vmul.f32 %v986, %v987
  %v989 = vsub.f32 1.0, %v988
  %v990 = vmul.f32 %v987, %v989
  %v991 = vadd.f32 %v987, %v990
  %vm992 = vweird.f32 %v986
  %vm993 = vweird.f32 %v987
  %vm994 = vmor %vm992, %vm993
  %v995 = vsel %vm994, %v987, %v991
  %v996 = vand.u32 2147483647, %v986
  %vm997 = vcmp.eq.f32.partialorder %v996, 8.507059e+37
  %v998 = vand.u32 %v986, 2147483648
  %v999 = vor.u32 1.1754944e-38, %v998
  %v1000 = vsel %vm997, %v999, %v995
  %v1001 = vmul.f32 1.0, %v1000
  %v1002 = vtanh.pop %v982
  %v1004 = vrot.slane %v944, 2
  %v1006 = vmul.f32 %v1001, %v1004
  %1008 = vrot.lane.b32.xlu0 %v1002, 64
  %v1009 = vpop.permute.xlu0 %1008
  %v1011 = vmul.f32 %v1001, %v1009
  %1013 = vrot.lane.b32.xlu0 %v1011, 32
  %v1014 = vpop.permute.xlu0 %1013
  %v1016 = vadd.f32 %v1006, %v1014
  %v1017 = vtanh.pop %v1016
  %1019 = vrot.lane.b32.xlu0 %v1017, 64
  %v1020 = vpop.permute.xlu0 %1019
  %v1022 = vmul.f32 %v1001, %v1020
  %1024 = vrot.lane.b32.xlu0 %v1022, 64
  %v1025 = vpop.permute.xlu0 %1024
  %vm1027 = vcmask 517376
  %1028 = vst.msk [vmem:[#allocation2 + $0x8] sm:$0x3] %vm1027, %v1025
  %1029 = vrot.lane.b32.xlu0 %v1022, 32
  %v1030 = vpop.permute.xlu0 %1029
  %v1031 = vsel %vm100, %v1030, 0
  %1033 = vmatpush.msra.mxu0 0.0
  %1034 = vmatpush.msra.mxu0 0.0
  %1035 = vmatpush.msra.mxu0 0.0
  %1036 = vmatpush.msra.mxu0 0.0
  %1037 = vmatpush.msra.mxu0 0.0
  %1038 = vmatpush.msra.mxu0 0.0
  %1039 = vmatpush.msra.mxu0 0.0
  %1040 = vmatpush.msra.mxu0 0.0
  %1041 = vmatpush.msra.mxu0 0.0
  %1042 = vmatpush.msra.mxu0 0.0
  %1043 = vmatpush.msra.mxu0 0.0
  %1044 = vmatpush.msra.mxu0 0.0
  %1045 = vmatpush.msra.mxu0 %v739
  %1046 = vmatpush.msra.mxu0 %v738
  %1047 = vmatpush.msra.mxu0 %v737
  %1048 = vmatpush.msra.mxu0 %v736
  %1049 = vmatmul.f32.gmra.mxu0 %v1031
  %v1050 = vpop.f32.mrf.mxu0
  %v1051 = vadd.f32 0.0, %v1050
  %1052 = vdwg.mxu0
  %v1054 = vrot.slane %v1051, 2
  %v1056 = vadd.f32 %v148, %v1054
  %v1057 = vxor.u32 %v1056, 2147483648
  %v1058 = vmul.f32 %v1057, 1.442695
  %v1059 = vpow.pop %v1058
  %v1060 = vadd.f32 %v1059, 1.0
  %v1061 = vrcp.pop %v1060
  %v1062 = vmul.f32 %v1060, %v1061
  %v1063 = vsub.f32 1.0, %v1062
  %v1064 = vmul.f32 %v1061, %v1063
  %v1065 = vadd.f32 %v1061, %v1064
  %vm1066 = vweird.f32 %v1060
  %vm1067 = vweird.f32 %v1061
  %vm1068 = vmor %vm1066, %vm1067
  %v1069 = vsel %vm1068, %v1061, %v1065
  %v1070 = vand.u32 2147483647, %v1060
  %vm1071 = vcmp.eq.f32.partialorder %v1070, 8.507059e+37
  %v1072 = vand.u32 %v1060, 2147483648
  %v1073 = vor.u32 1.1754944e-38, %v1072
  %v1074 = vsel %vm1071, %v1073, %v1069
  %v1075 = vmul.f32 1.0, %v1074
  %v1076 = vtanh.pop %v1056
  %v1078 = vrot.slane %v1016, 2
  %v1080 = vmul.f32 %v1075, %v1078
  %1082 = vrot.lane.b32.xlu0 %v1076, 64
  %v1083 = vpop.permute.xlu0 %1082
  %v1085 = vmul.f32 %v1075, %v1083
  %1087 = vrot.lane.b32.xlu0 %v1085, 32
  %v1088 = vpop.permute.xlu0 %1087
  %v1090 = vadd.f32 %v1080, %v1088
  %v1091 = vtanh.pop %v1090
  %1093 = vrot.lane.b32.xlu0 %v1091, 64
  %v1094 = vpop.permute.xlu0 %1093
  %v1096 = vmul.f32 %v1075, %v1094
  %1098 = vrot.lane.b32.xlu0 %v1096, 64
  %v1099 = vpop.permute.xlu0 %1098
  %1101 = vst.msk [vmem:[#allocation2] sm:$0xc0] %vm805, %v1099
  %v1102 = vrot.slane %v1096, 6
  %1103 = vrot.lane.b32.xlu0 %v1102, 32
  %v1104 = vpop.permute.xlu0 %1103
  %v1105 = vsel %vm100, %v1104, 0
  %1107 = vmatpush.msra.mxu0 0.0
  %1108 = vmatpush.msra.mxu0 0.0
  %1109 = vmatpush.msra.mxu0 0.0
  %1110 = vmatpush.msra.mxu0 0.0
  %1111 = vmatpush.msra.mxu0 0.0
  %1112 = vmatpush.msra.mxu0 0.0
  %1113 = vmatpush.msra.mxu0 0.0
  %1114 = vmatpush.msra.mxu0 0.0
  %1115 = vmatpush.msra.mxu0 0.0
  %1116 = vmatpush.msra.mxu0 0.0
  %1117 = vmatpush.msra.mxu0 0.0
  %1118 = vmatpush.msra.mxu0 0.0
  %1119 = vmatpush.msra.mxu0 %v739
  %1120 = vmatpush.msra.mxu0 %v738
  %1121 = vmatpush.msra.mxu0 %v737
  %1122 = vmatpush.msra.mxu0 %v736
  %1123 = vmatmul.f32.gmra.mxu0 %v1105
  %v1124 = vpop.f32.mrf.mxu0
  %v1125 = vadd.f32 0.0, %v1124
  %1126 = vdwg.mxu0
  %v1128 = vrot.slane %v1125, 4
  %v1130 = vadd.f32 %v148, %v1128
  %v1131 = vxor.u32 %v1130, 2147483648
  %v1132 = vmul.f32 %v1131, 1.442695
  %v1133 = vpow.pop %v1132
  %v1134 = vadd.f32 %v1133, 1.0
  %v1135 = vrcp.pop %v1134
  %v1136 = vmul.f32 %v1134, %v1135
  %v1137 = vsub.f32 1.0, %v1136
  %v1138 = vmul.f32 %v1135, %v1137
  %v1139 = vadd.f32 %v1135, %v1138
  %vm1140 = vweird.f32 %v1134
  %vm1141 = vweird.f32 %v1135
  %vm1142 = vmor %vm1140, %vm1141
  %v1143 = vsel %vm1142, %v1135, %v1139
  %v1144 = vand.u32 2147483647, %v1134
  %vm1145 = vcmp.eq.f32.partialorder %v1144, 8.507059e+37
  %v1146 = vand.u32 %v1134, 2147483648
  %v1147 = vor.u32 1.1754944e-38, %v1146
  %v1148 = vsel %vm1145, %v1147, %v1143
  %v1149 = vmul.f32 1.0, %v1148
  %v1150 = vtanh.pop %v1130
  %v1152 = vrot.slane %v1090, 2
  %v1154 = vmul.f32 %v1149, %v1152
  %1156 = vrot.lane.b32.xlu0 %v1150, 64
  %v1157 = vpop.permute.xlu0 %1156
  %v1159 = vmul.f32 %v1149, %v1157
  %1161 = vrot.lane.b32.xlu0 %v1159, 32
  %v1162 = vpop.permute.xlu0 %1161
  %v1164 = vadd.f32 %v1154, %v1162
  %v1165 = vtanh.pop %v1164
  %1167 = vrot.lane.b32.xlu0 %v1165, 64
  %v1168 = vpop.permute.xlu0 %1167
  %v1170 = vmul.f32 %v1149, %v1168
  %1172 = vrot.lane.b32.xlu0 %v1170, 64
  %v1173 = vpop.permute.xlu0 %1172
  %1175 = vst.msk [vmem:[#allocation2] sm:$0x30] %vm880, %v1173
  %v1176 = vrot.slane %v1170, 4
  %1177 = vrot.lane.b32.xlu0 %v1176, 32
  %v1178 = vpop.permute.xlu0 %1177
  %v1179 = vsel %vm100, %v1178, 0
  %1181 = vmatpush.msra.mxu0 0.0
  %1182 = vmatpush.msra.mxu0 0.0
  %1183 = vmatpush.msra.mxu0 0.0
  %1184 = vmatpush.msra.mxu0 0.0
  %1185 = vmatpush.msra.mxu0 0.0
  %1186 = vmatpush.msra.mxu0 0.0
  %1187 = vmatpush.msra.mxu0 0.0
  %1188 = vmatpush.msra.mxu0 0.0
  %1189 = vmatpush.msra.mxu0 0.0
  %1190 = vmatpush.msra.mxu0 0.0
  %1191 = vmatpush.msra.mxu0 0.0
  %1192 = vmatpush.msra.mxu0 0.0
  %1193 = vmatpush.msra.mxu0 %v739
  %1194 = vmatpush.msra.mxu0 %v738
  %1195 = vmatpush.msra.mxu0 %v737
  %1196 = vmatpush.msra.mxu0 %v736
  %1197 = vmatmul.f32.gmra.mxu0 %v1179
  %v1198 = vpop.f32.mrf.mxu0
  %v1199 = vadd.f32 0.0, %v1198
  %1200 = vdwg.mxu0
  %v1202 = vrot.slane %v1199, 6
  %v1204 = vadd.f32 %v148, %v1202
  %v1205 = vxor.u32 %v1204, 2147483648
  %v1206 = vmul.f32 %v1205, 1.442695
  %v1207 = vpow.pop %v1206
  %v1208 = vadd.f32 %v1207, 1.0
  %v1209 = vrcp.pop %v1208
  %v1210 = vmul.f32 %v1208, %v1209
  %v1211 = vsub.f32 1.0, %v1210
  %v1212 = vmul.f32 %v1209, %v1211
  %v1213 = vadd.f32 %v1209, %v1212
  %vm1214 = vweird.f32 %v1208
  %vm1215 = vweird.f32 %v1209
  %vm1216 = vmor %vm1214, %vm1215
  %v1217 = vsel %vm1216, %v1209, %v1213
  %v1218 = vand.u32 2147483647, %v1208
  %vm1219 = vcmp.eq.f32.partialorder %v1218, 8.507059e+37
  %v1220 = vand.u32 %v1208, 2147483648
  %v1221 = vor.u32 1.1754944e-38, %v1220
  %v1222 = vsel %vm1219, %v1221, %v1217
  %v1223 = vmul.f32 1.0, %v1222
  %v1224 = vtanh.pop %v1204
  %v1226 = vrot.slane %v1164, 2
  %v1228 = vmul.f32 %v1223, %v1226
  %1230 = vrot.lane.b32.xlu0 %v1224, 64
  %v1231 = vpop.permute.xlu0 %1230
  %v1233 = vmul.f32 %v1223, %v1231
  %1235 = vrot.lane.b32.xlu0 %v1233, 32
  %v1236 = vpop.permute.xlu0 %1235
  %v1238 = vadd.f32 %v1228, %v1236
  %v1239 = vtanh.pop %v1238
  %1241 = vrot.lane.b32.xlu0 %v1239, 64
  %v1242 = vpop.permute.xlu0 %1241
  %v1244 = vmul.f32 %v1223, %v1242
  %1246 = vrot.lane.b32.xlu0 %v1244, 64
  %v1247 = vpop.permute.xlu0 %1246
  %1249 = vst.msk [vmem:[#allocation2] sm:$0xc] %vm955, %v1247
  %v1250 = vrot.slane %v1244, 2
  %1251 = vrot.lane.b32.xlu0 %v1250, 32
  %v1252 = vpop.permute.xlu0 %1251
  %v1253 = vsel %vm100, %v1252, 0
  %1255 = vmatpush.msra.mxu0 0.0
  %1256 = vmatpush.msra.mxu0 0.0
  %1257 = vmatpush.msra.mxu0 0.0
  %1258 = vmatpush.msra.mxu0 0.0
  %1259 = vmatpush.msra.mxu0 0.0
  %1260 = vmatpush.msra.mxu0 0.0
  %1261 = vmatpush.msra.mxu0 0.0
  %1262 = vmatpush.msra.mxu0 0.0
  %1263 = vmatpush.msra.mxu0 0.0
  %1264 = vmatpush.msra.mxu0 0.0
  %1265 = vmatpush.msra.mxu0 0.0
  %1266 = vmatpush.msra.mxu0 0.0
  %1267 = vmatpush.msra.mxu0 %v739
  %1268 = vmatpush.msra.mxu0 %v738
  %1269 = vmatpush.msra.mxu0 %v737
  %1270 = vmatpush.msra.mxu0 %v736
  %1271 = vmatmul.f32.gmra.mxu0 %v1253
  %v1272 = vpop.f32.mrf.mxu0
  %v1273 = vadd.f32 0.0, %v1272
  %1274 = vdwg.mxu0
  %v1275 = vadd.f32 %v148, %v1273
  %v1276 = vxor.u32 %v1275, 2147483648
  %v1277 = vmul.f32 %v1276, 1.442695
  %v1278 = vpow.pop %v1277
  %v1279 = vadd.f32 %v1278, 1.0
  %v1280 = vrcp.pop %v1279
  %v1281 = vmul.f32 %v1279, %v1280
  %v1282 = vsub.f32 1.0, %v1281
  %v1283 = vmul.f32 %v1280, %v1282
  %v1284 = vadd.f32 %v1280, %v1283
  %vm1285 = vweird.f32 %v1279
  %vm1286 = vweird.f32 %v1280
  %vm1287 = vmor %vm1285, %vm1286
  %v1288 = vsel %vm1287, %v1280, %v1284
  %v1289 = vand.u32 2147483647, %v1279
  %vm1290 = vcmp.eq.f32.partialorder %v1289, 8.507059e+37
  %v1291 = vand.u32 %v1279, 2147483648
  %v1292 = vor.u32 1.1754944e-38, %v1291
  %v1293 = vsel %vm1290, %v1292, %v1288
  %v1294 = vmul.f32 1.0, %v1293
  %v1295 = vtanh.pop %v1275
  %v1297 = vrot.slane %v1238, 2
  %v1299 = vmul.f32 %v1294, %v1297
  %1301 = vrot.lane.b32.xlu0 %v1295, 64
  %v1302 = vpop.permute.xlu0 %1301
  %v1304 = vmul.f32 %v1294, %v1302
  %1306 = vrot.lane.b32.xlu0 %v1304, 32
  %v1307 = vpop.permute.xlu0 %1306
  %v1309 = vadd.f32 %v1299, %v1307
  %v1310 = vtanh.pop %v1309
  %1312 = vrot.lane.b32.xlu0 %v1310, 64
  %v1313 = vpop.permute.xlu0 %1312
  %v1315 = vmul.f32 %v1294, %v1313
  %1317 = vrot.lane.b32.xlu0 %v1315, 64
  %v1318 = vpop.permute.xlu0 %1317
  %1320 = vst.msk [vmem:[#allocation2] sm:$0x3] %vm1027, %v1318
  %v1321 = vld [vmem:[#allocation2] sm:$0xff]
  %v1322 = vld [vmem:[#allocation2 + $0x8] sm:$0xff]
  %v1323 = vld [vmem:[%s6] sm:$0xff]
  %v1324 = vld [vmem:[%s6 + $0x8] sm:$0xff]
  %v1325 = vld [vmem:[%s6 + $0x10] sm:$0xff]
  %v1326 = vld [vmem:[%s6 + $0x18] sm:$0xff]
  %v1327 = vld [vmem:[%s6 + $0x20] sm:$0xff]
  %v1328 = vld [vmem:[%s6 + $0x28] sm:$0xff]
  %v1329 = vld [vmem:[%s6 + $0x30] sm:$0xff]
  %v1330 = vld [vmem:[%s6 + $0x38] sm:$0xff]
  %v1331 = vld [vmem:[%s7] sm:$0x1]
  %v1333 = vperm.slane %v1331, 0
  %vm1335 = vcmask 523264
  %v1337 = vsel %vm1335, %v1321, 0
  %v1340 = vsel %vm1335, %v1322, 0
  %1342 = vmatpush.msra.mxu0 0.0
  %1343 = vmatpush.msra.mxu0 0.0
  %1344 = vmatpush.msra.mxu0 0.0
  %1345 = vmatpush.msra.mxu0 0.0
  %1346 = vmatpush.msra.mxu0 0.0
  %1347 = vmatpush.msra.mxu0 0.0
  %1348 = vmatpush.msra.mxu0 0.0
  %1349 = vmatpush.msra.mxu0 0.0
  %1350 = vmatpush.msra.mxu0 %v1330
  %1351 = vmatpush.msra.mxu0 %v1329
  %1352 = vmatpush.msra.mxu0 %v1328
  %1353 = vmatpush.msra.mxu0 %v1327
  %1354 = vmatpush.msra.mxu0 %v1326
  %1355 = vmatpush.msra.mxu0 %v1325
  %1356 = vmatpush.msra.mxu0 %v1324
  %1357 = vmatpush.msra.mxu0 %v1323
  %1358 = vmatmul.f32.gmra.mxu0 %v1337
  %v1359 = vpop.f32.mrf.mxu0
  %v1360 = vadd.f32 %v1333, %v1359
  %1361 = vmatmul.f32.gmra.mxu0 %v1340
  %v1362 = vpop.f32.mrf.mxu0
  %v1363 = vadd.f32 %v1333, %v1362
  %1364 = vdwg.mxu0
  %vm1365 = vcmask 64512
  %v1366 = vsel %vm1365, %v1360, -inf
  %1367 = vmax.xlane.f32.xlu0 %v1366
  %v1368 = vpop.xlane.xlu0 %1367
  %v1369 = vsel %vm1365, %v1363, -inf
  %1370 = vmax.xlane.f32.xlu0 %v1369
  %v1371 = vpop.xlane.xlu0 %1370
  %vm1372 = vcmp.eq.f32.partialorder %v1360, %v1368
  %vm1373 = vcmp.eq.f32.partialorder %v1363, %v1371
  %v1374 = vsel %vm1372, %v32, 8
  %v1375 = vsel %vm1373, %v32, 8
  %v1376 = vsel %vm1365, %v1374, 2147483647
  %v1377 = vand.u32 %v1376, 65535
  %v1378 = vshra.s32 %v1376, 16
  %v1379 = vcvt.s32.f32 %v1377
  %v1380 = vcvt.s32.f32 %v1378
  %1381 = vmin.xlane.f32.xlu0 %v1380
  %v1382 = vpop.xlane.xlu0 %1381
  %vm1383 = vcmp.eq.f32.partialorder %v1380, %v1382
  %v1384 = vsel %vm1383, %v1379, inf
  %1385 = vmin.xlane.f32.xlu0 %v1384
  %v1386 = vpop.xlane.xlu0 %1385
  %v1387 = vcvt.f32.s32 %v1386
  %v1388 = vcvt.f32.s32 %v1382
  %v1389 = vshll.u32 %v1388, 16
  %v1390 = vadd.s32 %v1389, %v1387
  %v1391 = vsel %vm1365, %v1375, 2147483647
  %v1392 = vand.u32 %v1391, 65535
  %v1393 = vshra.s32 %v1391, 16
  %v1394 = vcvt.s32.f32 %v1392
  %v1395 = vcvt.s32.f32 %v1393
  %1396 = vmin.xlane.f32.xlu0 %v1395
  %v1397 = vpop.xlane.xlu0 %1396
  %vm1398 = vcmp.eq.f32.partialorder %v1395, %v1397
  %v1399 = vsel %vm1398, %v1394, inf
  %1400 = vmin.xlane.f32.xlu0 %v1399
  %v1401 = vpop.xlane.xlu0 %1400
  %v1402 = vcvt.f32.s32 %v1401
  %v1403 = vcvt.f32.s32 %v1397
  %v1404 = vshll.u32 %v1403, 16
  %v1405 = vadd.s32 %v1404, %v1402
  %vm1406 = vcmask 7168
  %1407 = vst.msk [vmem:[%s8] sm:$0xff] %vm1406, %v1390
  %1408 = vst.msk [vmem:[%s8 + $0x8] sm:$0xff] %vm1406, %v1405
  // Predicated region
  $region34: #{bilstm_forward.1} parent=0 // pred_check
    _
  $region35: #{bilstm_forward.1} parent=0 // pred_check_branch
    %1410 = sbr.rel (0) target = $region37
  $region36: #{bilstm_forward.1} parent=0 // pred_region
    _
  $region37: #{bilstm_forward.1} parent=0 // pred_fallthru
    _
  // Predicated region
  $region38: #{bilstm_forward.1} parent=0 // pred_check
    _
  $region39: #{bilstm_forward.1} parent=0 // pred_check_branch
    %1412 = sbr.rel (0) target = $region41
  $region40: #{bilstm_forward.1} parent=0 // pred_region
    _
  $region41: #{bilstm_forward.1} parent=0 // pred_fallthru
    _

</llo_original>
